<compile_context>
chip_gen: v7x
topology: tpu7x:2x2x1
jax: 0.10.0
libtpu: 0.0.40
codegen_flags: <defaults>
</compile_context>

<pallas_src>
import functools

import jax
import jax.numpy as jnp
from jax import lax
from jax.experimental import pallas as pl
from jax.experimental.pallas import tpu as pltpu


def _round_up(x, m):
    return ((x + m - 1) // m) * m


def _lstm_chunk_kernel(xg_ref, wh_ref, h0_ref, c0_ref,
                       hseq_ref, clast_ref, h_sc, c_sc,
                       *, hidden_size, chunk):
    """Runs `chunk` LSTM steps for one (batch-tile, time-chunk) grid cell.

    xg_ref   : (chunk, Bt, 4H) precomputed x @ W_ih + b (streamed in)
    wh_ref   : (H, 4H)         recurrent weights (VMEM-resident, constant index)
    h0/c0    : (Bt, H)         initial state for this batch tile
    hseq_ref : (chunk, Bt, H)  h output for this time chunk (streamed out)
    clast_ref: (Bt, H)         final cell state (written on last chunk only)
    h_sc/c_sc: (Bt, H) f32     state carried across time chunks in VMEM scratch
    """
    t_idx = pl.program_id(1)

    @pl.when(t_idx == 0)
    def _():
        h_sc[...] = h0_ref[...].astype(jnp.float32)
        c_sc[...] = c0_ref[...].astype(jnp.float32)

    H = hidden_size
    wh = wh_ref[...]                                   # resident for the whole chunk

    def step(i, carry):
        h, c = carry
        # Only the recurrent projection remains; x @ W_ih + bias was hoisted out.
        gates = xg_ref[i].astype(jnp.float32) + jnp.dot(
            h, wh, preferred_element_type=jnp.float32)          # (Bt, 4H)
        # H is a multiple of 128 (padded in the wrapper), so these slices are
        # lane-tile aligned -> no in-kernel relayout copies.
        i_g = jax.nn.sigmoid(gates[:, 0 * H:1 * H])
        f_g = jax.nn.sigmoid(gates[:, 1 * H:2 * H])
        g_g = jnp.tanh(gates[:, 2 * H:3 * H])
        o_g = jax.nn.sigmoid(gates[:, 3 * H:4 * H])
        c_new = f_g * c + i_g * g_g
        h_new = o_g * jnp.tanh(c_new)
        hseq_ref[i] = h_new.astype(hseq_ref.dtype)              # unmasked lane-dense store
        return h_new, c_new

    h, c = lax.fori_loop(0, chunk, step, (h_sc[...], c_sc[...]),
                         unroll=min(chunk, 8))
    h_sc[...] = h
    c_sc[...] = c

    # Only the final cell state is written back to HBM (c_seq is never materialized).
    @pl.when(t_idx == pl.num_programs(1) - 1)
    def _():
        clast_ref[...] = c.astype(clast_ref.dtype)


def _pick_time_chunk(T, bt, Hp, itemsize, budget_bytes=8 * 1024 * 1024):
    """Largest divisor of T whose streamed (double-buffered) blocks fit the budget."""
    per_step = 2 * bt * (4 * Hp + Hp) * itemsize       # xgates in + h_seq out, x2 buffers
    cap = max(1, budget_bytes // per_step)
    best = 1
    for d in range(1, T + 1):
        if T % d == 0 and d <= cap:
            best = d
    return best


def _pick_batch_tile(Bp):
    """Split batch into two sublane-aligned tiles when possible (megacore)."""
    if Bp % 16 == 0:
        return Bp // 2
    return Bp


def lstm_layer(x, wx, wh, b, h0, c0):
    """Run one LSTM layer over a padded, time-major (T, Bp, Din) sequence.

    wx: (Din, 4Hp), wh: (Hp, 4Hp), b: (1, 4Hp), h0/c0: (Bp, Hp).
    Returns (h_seq, c_last): h_seq is (T, Bp, Hp), c_last is (Bp, Hp)."""
    T, Bp, _ = x.shape
    Hp = wh.shape[0]

    # Hoisted input projection: one big batched matmul over the whole sequence (XLA),
    # instead of T tiny M=B matmuls serialized inside the recurrence.
    xg = (jnp.einsum('tbd,dg->tbg', x, wx) + b).astype(x.dtype)   # (T, Bp, 4Hp)

    itemsize = x.dtype.itemsize
    bt = _pick_batch_tile(Bp)
    chunk = _pick_time_chunk(T, bt, Hp, itemsize)
    nb, nt = Bp // bt, T // chunk

    # VMEM budget: resident weight (x2 pipeline buffers) + streamed blocks + state.
    wh_bytes = 2 * Hp * 4 * Hp * wh.dtype.itemsize
    stream_bytes = 2 * chunk * bt * (4 * Hp + Hp) * itemsize
    state_bytes = (4 * bt * Hp * itemsize            # h0, c0 (double-buffered)
                   + 2 * bt * Hp * 4                 # f32 carry scratch
                   + 2 * bt * Hp * itemsize)         # c_last
    vmem_limit = int(min(64 * 1024 * 1024,
                         max(32 * 1024 * 1024,
                             1.3 * (wh_bytes + stream_bytes + state_bytes))))

    # TODO(synk): for very large Hp, store W_hh in bf16 (cast in-kernel) to halve the
    # resident VMEM footprint.
    kernel = functools.partial(_lstm_chunk_kernel, hidden_size=Hp, chunk=chunk)
    h_seq, c_last = pl.pallas_call(
        kernel,
        out_shape=(jax.ShapeDtypeStruct((T, Bp, Hp), x.dtype),
                   jax.ShapeDtypeStruct((Bp, Hp), x.dtype)),
        grid_spec=pltpu.PrefetchScalarGridSpec(
            num_scalar_prefetch=0,
            grid=(nb, nt),
            in_specs=[
                pl.BlockSpec((chunk, bt, 4 * Hp), lambda bi, ti: (ti, bi, 0)),  # xgates
                pl.BlockSpec((Hp, 4 * Hp), lambda bi, ti: (0, 0)),              # W_hh^T
                pl.BlockSpec((bt, Hp), lambda bi, ti: (bi, 0)),                 # h0
                pl.BlockSpec((bt, Hp), lambda bi, ti: (bi, 0)),                 # c0
            ],
            out_specs=[
                pl.BlockSpec((chunk, bt, Hp), lambda bi, ti: (ti, bi, 0)),      # h over time
                pl.BlockSpec((bt, Hp), lambda bi, ti: (bi, 0)),                 # final c
            ],
            scratch_shapes=[
                pltpu.VMEM((bt, Hp), jnp.float32),                              # h carry
                pltpu.VMEM((bt, Hp), jnp.float32),                              # c carry
            ],
        ),
        compiler_params=pltpu.CompilerParams(
            dimension_semantics=("parallel", "arbitrary"),
            vmem_limit_bytes=vmem_limit),
    )(xg, wh, h0, c0)
    return h_seq, c_last


def _pad_gate_cols(w, H, Hp):
    """Pad the last axis (laid out as 4 concatenated H-wide gate blocks) to 4*Hp."""
    if Hp == H:
        return w
    lead = w.shape[:-1]
    w = w.reshape(lead + (4, H))
    pad = [(0, 0)] * len(lead) + [(0, 0), (0, Hp - H)]
    return jnp.pad(w, pad).reshape(lead + (4 * Hp,))


def init_lstm_params(key, input_size, hidden_size, num_layers, dtype=jnp.float32):
    """Deterministic init matching torch.nn.LSTMCell.reset_parameters:
    U(-1/sqrt(H), 1/sqrt(H)) for all weights and biases."""
    params = []
    std = 1.0 / jnp.sqrt(jnp.float32(hidden_size))
    for layer in range(num_layers):
        layer_in = input_size if layer == 0 else hidden_size
        key, k1, k2, k3, k4 = jax.random.split(key, 5)
        wx = jax.random.uniform(k1, (layer_in, 4 * hidden_size), dtype, -std, std)
        wh = jax.random.uniform(k2, (hidden_size, 4 * hidden_size), dtype, -std, std)
        b_ih = jax.random.uniform(k3, (4 * hidden_size,), dtype, -std, std)
        b_hh = jax.random.uniform(k4, (4 * hidden_size,), dtype, -std, std)
        b = (b_ih + b_hh).reshape(1, 4 * hidden_size)
        params.append((wx, wh, b))
    return params


def lstm_forward(x, params, hidden_size, hx=None, batch_first=False):
    """Mirrors LSTM.forward: returns (output, (h_n, c_n)).

    x: (T, B, D) if batch_first=False else (B, T, D).
    output: (T, B, H); h_n, c_n: (num_layers, B, H).
    Note: like the reference PyTorch module, the SAME (B, H) hx is fed to every layer."""
    if batch_first:
        x = jnp.transpose(x, (1, 0, 2))
    T, B, _ = x.shape
    H = hidden_size
    Hp = _round_up(H, 128)   # lane-aligned hidden -> unmasked stores, aligned gate slices
    Bp = _round_up(B, 8)     # sublane-aligned batch

    if hx is None:
        h0 = jnp.zeros((B, H), x.dtype)
        hx = (h0, h0)

    # Zero-pad state/inputs once.  Padded hidden columns have zero weights & bias, so
    # their gate pre-activations are always 0 and (starting from c=0) their h/c stay
    # exactly 0 through the recurrence: padded activations flow between layers freely.
    h0p = jnp.pad(hx[0].astype(x.dtype), ((0, Bp - B), (0, Hp - H)))
    c0p = jnp.pad(hx[1].astype(x.dtype), ((0, Bp - B), (0, Hp - H)))
    layer_input = jnp.pad(x, ((0, 0), (0, Bp - B), (0, 0)))

    h_n, c_n = [], []
    for layer, (wx, wh, b) in enumerate(params):
        wx_p = _pad_gate_cols(wx, H, Hp)
        if layer > 0 and Hp != H:
            # Extra input rows are only ever multiplied by the zero-padded h columns.
            wx_p = jnp.pad(wx_p, ((0, Hp - H), (0, 0)))
        wh_p = jnp.pad(_pad_gate_cols(wh, H, Hp), ((0, Hp - H), (0, 0)))
        b_p = _pad_gate_cols(b, H, Hp)

        h_seq, c_last = lstm_layer(layer_input, wx_p, wh_p, b_p, h0p, c0p)
        h_n.append(h_seq[-1, :B, :H])
        c_n.append(c_last[:B, :H])
        # TODO(synk): inter-layer dropout is identity here (eval semantics / p=0).
        layer_input = h_seq

    output = layer_input[:, :B, :H]
    return output, (jnp.stack(h_n, 0), jnp.stack(c_n, 0))


def _reference_lstm(x, params, hidden_size, hx=None):
    """Pure-JAX reference for correctness checking."""
    T, B, _ = x.shape
    if hx is None:
        h0 = jnp.zeros((B, hidden_size), x.dtype)
        hx = (h0, h0)
    h_n, c_n = [], []
    layer_input = x
    for (wx, wh, b) in params:
        h, c = hx
        outs = []
        for t in range(T):
            gates = layer_input[t] @ wx + h @ wh + b
            i = jax.nn.sigmoid(gates[:, 0 * hidden_size:1 * hidden_size])
            f = jax.nn.sigmoid(gates[:, 1 * hidden_size:2 * hidden_size])
            g = jnp.tanh(gates[:, 2 * hidden_size:3 * hidden_size])
            o = jax.nn.sigmoid(gates[:, 3 * hidden_size:4 * hidden_size])
            c = f * c + i * g
            h = o * jnp.tanh(c)
            outs.append(h)
        layer_input = jnp.stack(outs, 0)
        h_n.append(h)
        c_n.append(c)
    return layer_input, (jnp.stack(h_n, 0), jnp.stack(c_n, 0))


if __name__ == "__main__":
    T, B, D, H, L = 8, 2, 16, 32, 2

    key = jax.random.PRNGKey(0)
    key, kx = jax.random.split(key)
    x = jax.random.normal(kx, (T, B, D), jnp.float32)
    params = init_lstm_params(key, D, H, L)

    output, (h_n, c_n) = lstm_forward(x, params, H)
    output = jax.block_until_ready(output)
    h_n = jax.block_until_ready(h_n)
    c_n = jax.block_until_ready(c_n)

    assert output.shape == (T, B, H)
    assert h_n.shape == (L, B, H) and c_n.shape == (L, B, H)

    ref_out, (ref_h, ref_c) = _reference_lstm(x, params, H)
    assert jnp.allclose(output, ref_out, atol=1e-5, rtol=1e-5)
    assert jnp.allclose(h_n, ref_h, atol=1e-5, rtol=1e-5)
    assert jnp.allclose(c_n, ref_c, atol=1e-5, rtol=1e-5)

    print("KERNEL_OK")
</pallas_src>

<mosaic_0001>
module attributes {stable_mosaic.version = 11 : i64} {
  func.func @_lstm_chunk_kernel(%arg0: i32, %arg1: i32, %arg2: memref<8x8x512xf32, #tpu.memory_space<vmem>>, %arg3: memref<128x512xf32, #tpu.memory_space<vmem>>, %arg4: memref<8x128xf32, #tpu.memory_space<vmem>>, %arg5: memref<8x128xf32, #tpu.memory_space<vmem>>, %arg6: memref<8x8x128xf32, #tpu.memory_space<vmem>>, %arg7: memref<8x128xf32, #tpu.memory_space<vmem>>, %arg8: memref<8x128xf32, #tpu.memory_space<vmem>>, %arg9: memref<8x128xf32, #tpu.memory_space<vmem>>) attributes {dimension_semantics = [#tpu.dimension_semantics<parallel>, #tpu.dimension_semantics<arbitrary>], iteration_bounds = array<i64: 1, 1>, scalar_prefetch = 0 : i64, scratch_operands = 2 : i64, tpu.core_type = #tpu.core_type<tc>, window_params = [{transform_indices = @transform_0, window_bounds = array<i64: 8, 8, 512>}, {pipeline_mode = #tpu.pipeline_mode<synchronous>, transform_indices = @transform_1, window_bounds = array<i64: 128, 512>}, {transform_indices = @transform_2, window_bounds = array<i64: 8, 128>}, {transform_indices = @transform_3, window_bounds = array<i64: 8, 128>}, {transform_indices = @transform_4, window_bounds = array<i64: 8, 8, 128>}, {transform_indices = @transform_5, window_bounds = array<i64: 8, 128>}]} {
    %c0_i32 = arith.constant 0 : i32
    %0 = arith.cmpi eq, %arg1, %c0_i32 : i32
    %1 = arith.extui %0 : i1 to i32
    %c0_i32_0 = arith.constant 0 : i32
    %2 = arith.cmpi ne, %1, %c0_i32_0 : i32
    scf.if %2 {
      %c0_76 = arith.constant 0 : index
      %c0_77 = arith.constant 0 : index
      %283 = vector.load %arg4[%c0_76, %c0_77] : memref<8x128xf32, #tpu.memory_space<vmem>>, vector<8x128xf32>
      %c0_78 = arith.constant 0 : index
      %c0_79 = arith.constant 0 : index
      %284 = vector.load %arg8[%c0_78, %c0_79] : memref<8x128xf32, #tpu.memory_space<vmem>>, vector<8x128xf32>
      tpu.vector_store %arg8[%c0_78, %c0_79], %283 {strides = array<i32>} : memref<8x128xf32, #tpu.memory_space<vmem>>, vector<8x128xf32>,
      %c0_80 = arith.constant 0 : index
      %c0_81 = arith.constant 0 : index
      %285 = vector.load %arg5[%c0_80, %c0_81] : memref<8x128xf32, #tpu.memory_space<vmem>>, vector<8x128xf32>
      %c0_82 = arith.constant 0 : index
      %c0_83 = arith.constant 0 : index
      %286 = vector.load %arg9[%c0_82, %c0_83] : memref<8x128xf32, #tpu.memory_space<vmem>>, vector<8x128xf32>
      tpu.vector_store %arg9[%c0_82, %c0_83], %285 {strides = array<i32>} : memref<8x128xf32, #tpu.memory_space<vmem>>, vector<8x128xf32>,
    } else {
    }
    %c0 = arith.constant 0 : index
    %c0_1 = arith.constant 0 : index
    %3 = vector.load %arg3[%c0, %c0_1] : memref<128x512xf32, #tpu.memory_space<vmem>>, vector<128x512xf32>
    %c0_2 = arith.constant 0 : index
    %c0_3 = arith.constant 0 : index
    %4 = vector.load %arg8[%c0_2, %c0_3] : memref<8x128xf32, #tpu.memory_space<vmem>>, vector<8x128xf32>
    %c0_4 = arith.constant 0 : index
    %c0_5 = arith.constant 0 : index
    %5 = vector.load %arg9[%c0_4, %c0_5] : memref<8x128xf32, #tpu.memory_space<vmem>>, vector<8x128xf32>
    %c0_i32_6 = arith.constant 0 : i32
    %6 = arith.index_cast %c0_i32_6 : i32 to index
    %c0_7 = arith.constant 0 : index
    %c0_8 = arith.constant 0 : index
    %7 = vector.load %arg2[%6, %c0_7, %c0_8] : memref<8x8x512xf32, #tpu.memory_space<vmem>>, vector<1x8x512xf32>
    %8 = vector.shape_cast %7 : vector<1x8x512xf32> to vector<8x512xf32>
    %cst = arith.constant dense<0.000000e+00> : vector<8x512xf32>
    %9 = tpu.matmul %4, %3, %cst {dimension_numbers = #tpu.dot_dimension_numbers<[1], [0], [0], [1], [0, 0, 1, 1], [], []>} : vector<8x128xf32>, vector<128x512xf32>, vector<8x512xf32> -> vector<8x512xf32>
    %10 = arith.addf %8, %9 : vector<8x512xf32>
    %11 = vector.extract_strided_slice %10 {offsets = [0, 0], sizes = [8, 128], strides = [1, 1]} : vector<8x512xf32> to vector<8x128xf32>
    %12 = arith.negf %11 : vector<8x128xf32>
    %13 = math.exp %12 : vector<8x128xf32>
    %cst_9 = arith.constant 1.000000e+00 : f32
    %14 = vector.broadcast %cst_9 : f32 to vector<8x128xf32>
    %15 = arith.addf %14, %13 : vector<8x128xf32>
    %16 = arith.divf %14, %15 : vector<8x128xf32>
    %17 = vector.extract_strided_slice %10 {offsets = [0, 128], sizes = [8, 128], strides = [1, 1]} : vector<8x512xf32> to vector<8x128xf32>
    %18 = arith.negf %17 : vector<8x128xf32>
    %19 = math.exp %18 : vector<8x128xf32>
    %cst_10 = arith.constant 1.000000e+00 : f32
    %20 = vector.broadcast %cst_10 : f32 to vector<8x128xf32>
    %21 = arith.addf %20, %19 : vector<8x128xf32>
    %22 = arith.divf %20, %21 : vector<8x128xf32>
    %23 = vector.extract_strided_slice %10 {offsets = [0, 256], sizes = [8, 128], strides = [1, 1]} : vector<8x512xf32> to vector<8x128xf32>
    %24 = math.tanh %23 : vector<8x128xf32>
    %25 = vector.extract_strided_slice %10 {offsets = [0, 384], sizes = [8, 128], strides = [1, 1]} : vector<8x512xf32> to vector<8x128xf32>
    %26 = arith.negf %25 : vector<8x128xf32>
    %27 = math.exp %26 : vector<8x128xf32>
    %cst_11 = arith.constant 1.000000e+00 : f32
    %28 = vector.broadcast %cst_11 : f32 to vector<8x128xf32>
    %29 = arith.addf %28, %27 : vector<8x128xf32>
    %30 = arith.divf %28, %29 : vector<8x128xf32>
    %31 = arith.mulf %22, %5 : vector<8x128xf32>
    %32 = arith.mulf %16, %24 : vector<8x128xf32>
    %33 = arith.addf %31, %32 : vector<8x128xf32>
    %34 = math.tanh %33 : vector<8x128xf32>
    %35 = arith.mulf %30, %34 : vector<8x128xf32>
    %36 = arith.index_cast %c0_i32_6 : i32 to index
    %c0_12 = arith.constant 0 : index
    %c0_13 = arith.constant 0 : index
    %37 = vector.load %arg6[%36, %c0_12, %c0_13] : memref<8x8x128xf32, #tpu.memory_space<vmem>>, vector<1x8x128xf32>
    %38 = vector.shape_cast %37 : vector<1x8x128xf32> to vector<8x128xf32>
    %39 = vector.shape_cast %35 : vector<8x128xf32> to vector<1x8x128xf32>
    tpu.vector_store %arg6[%36, %c0_12, %c0_13], %39 {strides = array<i32>} : memref<8x8x128xf32, #tpu.memory_space<vmem>>, vector<1x8x128xf32>,
    %c1_i32 = arith.constant 1 : i32
    %40 = arith.index_cast %c1_i32 : i32 to index
    %c0_14 = arith.constant 0 : index
    %c0_15 = arith.constant 0 : index
    %41 = vector.load %arg2[%40, %c0_14, %c0_15] : memref<8x8x512xf32, #tpu.memory_space<vmem>>, vector<1x8x512xf32>
    %42 = vector.shape_cast %41 : vector<1x8x512xf32> to vector<8x512xf32>
    %cst_16 = arith.constant dense<0.000000e+00> : vector<8x512xf32>
    %43 = tpu.matmul %35, %3, %cst_16 {dimension_numbers = #tpu.dot_dimension_numbers<[1], [0], [0], [1], [0, 0, 1, 1], [], []>} : vector<8x128xf32>, vector<128x512xf32>, vector<8x512xf32> -> vector<8x512xf32>
    %44 = arith.addf %42, %43 : vector<8x512xf32>
    %45 = vector.extract_strided_slice %44 {offsets = [0, 0], sizes = [8, 128], strides = [1, 1]} : vector<8x512xf32> to vector<8x128xf32>
    %46 = arith.negf %45 : vector<8x128xf32>
    %47 = math.exp %46 : vector<8x128xf32>
    %cst_17 = arith.constant 1.000000e+00 : f32
    %48 = vector.broadcast %cst_17 : f32 to vector<8x128xf32>
    %49 = arith.addf %48, %47 : vector<8x128xf32>
    %50 = arith.divf %48, %49 : vector<8x128xf32>
    %51 = vector.extract_strided_slice %44 {offsets = [0, 128], sizes = [8, 128], strides = [1, 1]} : vector<8x512xf32> to vector<8x128xf32>
    %52 = arith.negf %51 : vector<8x128xf32>
    %53 = math.exp %52 : vector<8x128xf32>
    %cst_18 = arith.constant 1.000000e+00 : f32
    %54 = vector.broadcast %cst_18 : f32 to vector<8x128xf32>
    %55 = arith.addf %54, %53 : vector<8x128xf32>
    %56 = arith.divf %54, %55 : vector<8x128xf32>
    %57 = vector.extract_strided_slice %44 {offsets = [0, 256], sizes = [8, 128], strides = [1, 1]} : vector<8x512xf32> to vector<8x128xf32>
    %58 = math.tanh %57 : vector<8x128xf32>
    %59 = vector.extract_strided_slice %44 {offsets = [0, 384], sizes = [8, 128], strides = [1, 1]} : vector<8x512xf32> to vector<8x128xf32>
    %60 = arith.negf %59 : vector<8x128xf32>
    %61 = math.exp %60 : vector<8x128xf32>
    %cst_19 = arith.constant 1.000000e+00 : f32
    %62 = vector.broadcast %cst_19 : f32 to vector<8x128xf32>
    %63 = arith.addf %62, %61 : vector<8x128xf32>
    %64 = arith.divf %62, %63 : vector<8x128xf32>
    %65 = arith.mulf %56, %33 : vector<8x128xf32>
    %66 = arith.mulf %50, %58 : vector<8x128xf32>
    %67 = arith.addf %65, %66 : vector<8x128xf32>
    %68 = math.tanh %67 : vector<8x128xf32>
    %69 = arith.mulf %64, %68 : vector<8x128xf32>
    %70 = arith.index_cast %c1_i32 : i32 to index
    %c0_20 = arith.constant 0 : index
    %c0_21 = arith.constant 0 : index
    %71 = vector.load %arg6[%70, %c0_20, %c0_21] : memref<8x8x128xf32, #tpu.memory_space<vmem>>, vector<1x8x128xf32>
    %72 = vector.shape_cast %71 : vector<1x8x128xf32> to vector<8x128xf32>
    %73 = vector.shape_cast %69 : vector<8x128xf32> to vector<1x8x128xf32>
    tpu.vector_store %arg6[%70, %c0_20, %c0_21], %73 {strides = array<i32>} : memref<8x8x128xf32, #tpu.memory_space<vmem>>, vector<1x8x128xf32>,
    %c2_i32 = arith.constant 2 : i32
    %74 = arith.index_cast %c2_i32 : i32 to index
    %c0_22 = arith.constant 0 : index
    %c0_23 = arith.constant 0 : index
    %75 = vector.load %arg2[%74, %c0_22, %c0_23] : memref<8x8x512xf32, #tpu.memory_space<vmem>>, vector<1x8x512xf32>
    %76 = vector.shape_cast %75 : vector<1x8x512xf32> to vector<8x512xf32>
    %cst_24 = arith.constant dense<0.000000e+00> : vector<8x512xf32>
    %77 = tpu.matmul %69, %3, %cst_24 {dimension_numbers = #tpu.dot_dimension_numbers<[1], [0], [0], [1], [0, 0, 1, 1], [], []>} : vector<8x128xf32>, vector<128x512xf32>, vector<8x512xf32> -> vector<8x512xf32>
    %78 = arith.addf %76, %77 : vector<8x512xf32>
    %79 = vector.extract_strided_slice %78 {offsets = [0, 0], sizes = [8, 128], strides = [1, 1]} : vector<8x512xf32> to vector<8x128xf32>
    %80 = arith.negf %79 : vector<8x128xf32>
    %81 = math.exp %80 : vector<8x128xf32>
    %cst_25 = arith.constant 1.000000e+00 : f32
    %82 = vector.broadcast %cst_25 : f32 to vector<8x128xf32>
    %83 = arith.addf %82, %81 : vector<8x128xf32>
    %84 = arith.divf %82, %83 : vector<8x128xf32>
    %85 = vector.extract_strided_slice %78 {offsets = [0, 128], sizes = [8, 128], strides = [1, 1]} : vector<8x512xf32> to vector<8x128xf32>
    %86 = arith.negf %85 : vector<8x128xf32>
    %87 = math.exp %86 : vector<8x128xf32>
    %cst_26 = arith.constant 1.000000e+00 : f32
    %88 = vector.broadcast %cst_26 : f32 to vector<8x128xf32>
    %89 = arith.addf %88, %87 : vector<8x128xf32>
    %90 = arith.divf %88, %89 : vector<8x128xf32>
    %91 = vector.extract_strided_slice %78 {offsets = [0, 256], sizes = [8, 128], strides = [1, 1]} : vector<8x512xf32> to vector<8x128xf32>
    %92 = math.tanh %91 : vector<8x128xf32>
    %93 = vector.extract_strided_slice %78 {offsets = [0, 384], sizes = [8, 128], strides = [1, 1]} : vector<8x512xf32> to vector<8x128xf32>
    %94 = arith.negf %93 : vector<8x128xf32>
    %95 = math.exp %94 : vector<8x128xf32>
    %cst_27 = arith.constant 1.000000e+00 : f32
    %96 = vector.broadcast %cst_27 : f32 to vector<8x128xf32>
    %97 = arith.addf %96, %95 : vector<8x128xf32>
    %98 = arith.divf %96, %97 : vector<8x128xf32>
    %99 = arith.mulf %90, %67 : vector<8x128xf32>
    %100 = arith.mulf %84, %92 : vector<8x128xf32>
    %101 = arith.addf %99, %100 : vector<8x128xf32>
    %102 = math.tanh %101 : vector<8x128xf32>
    %103 = arith.mulf %98, %102 : vector<8x128xf32>
    %104 = arith.index_cast %c2_i32 : i32 to index
    %c0_28 = arith.constant 0 : index
    %c0_29 = arith.constant 0 : index
    %105 = vector.load %arg6[%104, %c0_28, %c0_29] : memref<8x8x128xf32, #tpu.memory_space<vmem>>, vector<1x8x128xf32>
    %106 = vector.shape_cast %105 : vector<1x8x128xf32> to vector<8x128xf32>
    %107 = vector.shape_cast %103 : vector<8x128xf32> to vector<1x8x128xf32>
    tpu.vector_store %arg6[%104, %c0_28, %c0_29], %107 {strides = array<i32>} : memref<8x8x128xf32, #tpu.memory_space<vmem>>, vector<1x8x128xf32>,
    %c3_i32 = arith.constant 3 : i32
    %108 = arith.index_cast %c3_i32 : i32 to index
    %c0_30 = arith.constant 0 : index
    %c0_31 = arith.constant 0 : index
    %109 = vector.load %arg2[%108, %c0_30, %c0_31] : memref<8x8x512xf32, #tpu.memory_space<vmem>>, vector<1x8x512xf32>
    %110 = vector.shape_cast %109 : vector<1x8x512xf32> to vector<8x512xf32>
    %cst_32 = arith.constant dense<0.000000e+00> : vector<8x512xf32>
    %111 = tpu.matmul %103, %3, %cst_32 {dimension_numbers = #tpu.dot_dimension_numbers<[1], [0], [0], [1], [0, 0, 1, 1], [], []>} : vector<8x128xf32>, vector<128x512xf32>, vector<8x512xf32> -> vector<8x512xf32>
    %112 = arith.addf %110, %111 : vector<8x512xf32>
    %113 = vector.extract_strided_slice %112 {offsets = [0, 0], sizes = [8, 128], strides = [1, 1]} : vector<8x512xf32> to vector<8x128xf32>
    %114 = arith.negf %113 : vector<8x128xf32>
    %115 = math.exp %114 : vector<8x128xf32>
    %cst_33 = arith.constant 1.000000e+00 : f32
    %116 = vector.broadcast %cst_33 : f32 to vector<8x128xf32>
    %117 = arith.addf %116, %115 : vector<8x128xf32>
    %118 = arith.divf %116, %117 : vector<8x128xf32>
    %119 = vector.extract_strided_slice %112 {offsets = [0, 128], sizes = [8, 128], strides = [1, 1]} : vector<8x512xf32> to vector<8x128xf32>
    %120 = arith.negf %119 : vector<8x128xf32>
    %121 = math.exp %120 : vector<8x128xf32>
    %cst_34 = arith.constant 1.000000e+00 : f32
    %122 = vector.broadcast %cst_34 : f32 to vector<8x128xf32>
    %123 = arith.addf %122, %121 : vector<8x128xf32>
    %124 = arith.divf %122, %123 : vector<8x128xf32>
    %125 = vector.extract_strided_slice %112 {offsets = [0, 256], sizes = [8, 128], strides = [1, 1]} : vector<8x512xf32> to vector<8x128xf32>
    %126 = math.tanh %125 : vector<8x128xf32>
    %127 = vector.extract_strided_slice %112 {offsets = [0, 384], sizes = [8, 128], strides = [1, 1]} : vector<8x512xf32> to vector<8x128xf32>
    %128 = arith.negf %127 : vector<8x128xf32>
    %129 = math.exp %128 : vector<8x128xf32>
    %cst_35 = arith.constant 1.000000e+00 : f32
    %130 = vector.broadcast %cst_35 : f32 to vector<8x128xf32>
    %131 = arith.addf %130, %129 : vector<8x128xf32>
    %132 = arith.divf %130, %131 : vector<8x128xf32>
    %133 = arith.mulf %124, %101 : vector<8x128xf32>
    %134 = arith.mulf %118, %126 : vector<8x128xf32>
    %135 = arith.addf %133, %134 : vector<8x128xf32>
    %136 = math.tanh %135 : vector<8x128xf32>
    %137 = arith.mulf %132, %136 : vector<8x128xf32>
    %138 = arith.index_cast %c3_i32 : i32 to index
    %c0_36 = arith.constant 0 : index
    %c0_37 = arith.constant 0 : index
    %139 = vector.load %arg6[%138, %c0_36, %c0_37] : memref<8x8x128xf32, #tpu.memory_space<vmem>>, vector<1x8x128xf32>
    %140 = vector.shape_cast %139 : vector<1x8x128xf32> to vector<8x128xf32>
    %141 = vector.shape_cast %137 : vector<8x128xf32> to vector<1x8x128xf32>
    tpu.vector_store %arg6[%138, %c0_36, %c0_37], %141 {strides = array<i32>} : memref<8x8x128xf32, #tpu.memory_space<vmem>>, vector<1x8x128xf32>,
    %c4_i32 = arith.constant 4 : i32
    %142 = arith.index_cast %c4_i32 : i32 to index
    %c0_38 = arith.constant 0 : index
    %c0_39 = arith.constant 0 : index
    %143 = vector.load %arg2[%142, %c0_38, %c0_39] : memref<8x8x512xf32, #tpu.memory_space<vmem>>, vector<1x8x512xf32>
    %144 = vector.shape_cast %143 : vector<1x8x512xf32> to vector<8x512xf32>
    %cst_40 = arith.constant dense<0.000000e+00> : vector<8x512xf32>
    %145 = tpu.matmul %137, %3, %cst_40 {dimension_numbers = #tpu.dot_dimension_numbers<[1], [0], [0], [1], [0, 0, 1, 1], [], []>} : vector<8x128xf32>, vector<128x512xf32>, vector<8x512xf32> -> vector<8x512xf32>
    %146 = arith.addf %144, %145 : vector<8x512xf32>
    %147 = vector.extract_strided_slice %146 {offsets = [0, 0], sizes = [8, 128], strides = [1, 1]} : vector<8x512xf32> to vector<8x128xf32>
    %148 = arith.negf %147 : vector<8x128xf32>
    %149 = math.exp %148 : vector<8x128xf32>
    %cst_41 = arith.constant 1.000000e+00 : f32
    %150 = vector.broadcast %cst_41 : f32 to vector<8x128xf32>
    %151 = arith.addf %150, %149 : vector<8x128xf32>
    %152 = arith.divf %150, %151 : vector<8x128xf32>
    %153 = vector.extract_strided_slice %146 {offsets = [0, 128], sizes = [8, 128], strides = [1, 1]} : vector<8x512xf32> to vector<8x128xf32>
    %154 = arith.negf %153 : vector<8x128xf32>
    %155 = math.exp %154 : vector<8x128xf32>
    %cst_42 = arith.constant 1.000000e+00 : f32
    %156 = vector.broadcast %cst_42 : f32 to vector<8x128xf32>
    %157 = arith.addf %156, %155 : vector<8x128xf32>
    %158 = arith.divf %156, %157 : vector<8x128xf32>
    %159 = vector.extract_strided_slice %146 {offsets = [0, 256], sizes = [8, 128], strides = [1, 1]} : vector<8x512xf32> to vector<8x128xf32>
    %160 = math.tanh %159 : vector<8x128xf32>
    %161 = vector.extract_strided_slice %146 {offsets = [0, 384], sizes = [8, 128], strides = [1, 1]} : vector<8x512xf32> to vector<8x128xf32>
    %162 = arith.negf %161 : vector<8x128xf32>
    %163 = math.exp %162 : vector<8x128xf32>
    %cst_43 = arith.constant 1.000000e+00 : f32
    %164 = vector.broadcast %cst_43 : f32 to vector<8x128xf32>
    %165 = arith.addf %164, %163 : vector<8x128xf32>
    %166 = arith.divf %164, %165 : vector<8x128xf32>
    %167 = arith.mulf %158, %135 : vector<8x128xf32>
    %168 = arith.mulf %152, %160 : vector<8x128xf32>
    %169 = arith.addf %167, %168 : vector<8x128xf32>
    %170 = math.tanh %169 : vector<8x128xf32>
    %171 = arith.mulf %166, %170 : vector<8x128xf32>
    %172 = arith.index_cast %c4_i32 : i32 to index
    %c0_44 = arith.constant 0 : index
    %c0_45 = arith.constant 0 : index
    %173 = vector.load %arg6[%172, %c0_44, %c0_45] : memref<8x8x128xf32, #tpu.memory_space<vmem>>, vector<1x8x128xf32>
    %174 = vector.shape_cast %173 : vector<1x8x128xf32> to vector<8x128xf32>
    %175 = vector.shape_cast %171 : vector<8x128xf32> to vector<1x8x128xf32>
    tpu.vector_store %arg6[%172, %c0_44, %c0_45], %175 {strides = array<i32>} : memref<8x8x128xf32, #tpu.memory_space<vmem>>, vector<1x8x128xf32>,
    %c5_i32 = arith.constant 5 : i32
    %176 = arith.index_cast %c5_i32 : i32 to index
    %c0_46 = arith.constant 0 : index
    %c0_47 = arith.constant 0 : index
    %177 = vector.load %arg2[%176, %c0_46, %c0_47] : memref<8x8x512xf32, #tpu.memory_space<vmem>>, vector<1x8x512xf32>
    %178 = vector.shape_cast %177 : vector<1x8x512xf32> to vector<8x512xf32>
    %cst_48 = arith.constant dense<0.000000e+00> : vector<8x512xf32>
    %179 = tpu.matmul %171, %3, %cst_48 {dimension_numbers = #tpu.dot_dimension_numbers<[1], [0], [0], [1], [0, 0, 1, 1], [], []>} : vector<8x128xf32>, vector<128x512xf32>, vector<8x512xf32> -> vector<8x512xf32>
    %180 = arith.addf %178, %179 : vector<8x512xf32>
    %181 = vector.extract_strided_slice %180 {offsets = [0, 0], sizes = [8, 128], strides = [1, 1]} : vector<8x512xf32> to vector<8x128xf32>
    %182 = arith.negf %181 : vector<8x128xf32>
    %183 = math.exp %182 : vector<8x128xf32>
    %cst_49 = arith.constant 1.000000e+00 : f32
    %184 = vector.broadcast %cst_49 : f32 to vector<8x128xf32>
    %185 = arith.addf %184, %183 : vector<8x128xf32>
    %186 = arith.divf %184, %185 : vector<8x128xf32>
    %187 = vector.extract_strided_slice %180 {offsets = [0, 128], sizes = [8, 128], strides = [1, 1]} : vector<8x512xf32> to vector<8x128xf32>
    %188 = arith.negf %187 : vector<8x128xf32>
    %189 = math.exp %188 : vector<8x128xf32>
    %cst_50 = arith.constant 1.000000e+00 : f32
    %190 = vector.broadcast %cst_50 : f32 to vector<8x128xf32>
    %191 = arith.addf %190, %189 : vector<8x128xf32>
    %192 = arith.divf %190, %191 : vector<8x128xf32>
    %193 = vector.extract_strided_slice %180 {offsets = [0, 256], sizes = [8, 128], strides = [1, 1]} : vector<8x512xf32> to vector<8x128xf32>
    %194 = math.tanh %193 : vector<8x128xf32>
    %195 = vector.extract_strided_slice %180 {offsets = [0, 384], sizes = [8, 128], strides = [1, 1]} : vector<8x512xf32> to vector<8x128xf32>
    %196 = arith.negf %195 : vector<8x128xf32>
    %197 = math.exp %196 : vector<8x128xf32>
    %cst_51 = arith.constant 1.000000e+00 : f32
    %198 = vector.broadcast %cst_51 : f32 to vector<8x128xf32>
    %199 = arith.addf %198, %197 : vector<8x128xf32>
    %200 = arith.divf %198, %199 : vector<8x128xf32>
    %201 = arith.mulf %192, %169 : vector<8x128xf32>
    %202 = arith.mulf %186, %194 : vector<8x128xf32>
    %203 = arith.addf %201, %202 : vector<8x128xf32>
    %204 = math.tanh %203 : vector<8x128xf32>
    %205 = arith.mulf %200, %204 : vector<8x128xf32>
    %206 = arith.index_cast %c5_i32 : i32 to index
    %c0_52 = arith.constant 0 : index
    %c0_53 = arith.constant 0 : index
    %207 = vector.load %arg6[%206, %c0_52, %c0_53] : memref<8x8x128xf32, #tpu.memory_space<vmem>>, vector<1x8x128xf32>
    %208 = vector.shape_cast %207 : vector<1x8x128xf32> to vector<8x128xf32>
    %209 = vector.shape_cast %205 : vector<8x128xf32> to vector<1x8x128xf32>
    tpu.vector_store %arg6[%206, %c0_52, %c0_53], %209 {strides = array<i32>} : memref<8x8x128xf32, #tpu.memory_space<vmem>>, vector<1x8x128xf32>,
    %c6_i32 = arith.constant 6 : i32
    %210 = arith.index_cast %c6_i32 : i32 to index
    %c0_54 = arith.constant 0 : index
    %c0_55 = arith.constant 0 : index
    %211 = vector.load %arg2[%210, %c0_54, %c0_55] : memref<8x8x512xf32, #tpu.memory_space<vmem>>, vector<1x8x512xf32>
    %212 = vector.shape_cast %211 : vector<1x8x512xf32> to vector<8x512xf32>
    %cst_56 = arith.constant dense<0.000000e+00> : vector<8x512xf32>
    %213 = tpu.matmul %205, %3, %cst_56 {dimension_numbers = #tpu.dot_dimension_numbers<[1], [0], [0], [1], [0, 0, 1, 1], [], []>} : vector<8x128xf32>, vector<128x512xf32>, vector<8x512xf32> -> vector<8x512xf32>
    %214 = arith.addf %212, %213 : vector<8x512xf32>
    %215 = vector.extract_strided_slice %214 {offsets = [0, 0], sizes = [8, 128], strides = [1, 1]} : vector<8x512xf32> to vector<8x128xf32>
    %216 = arith.negf %215 : vector<8x128xf32>
    %217 = math.exp %216 : vector<8x128xf32>
    %cst_57 = arith.constant 1.000000e+00 : f32
    %218 = vector.broadcast %cst_57 : f32 to vector<8x128xf32>
    %219 = arith.addf %218, %217 : vector<8x128xf32>
    %220 = arith.divf %218, %219 : vector<8x128xf32>
    %221 = vector.extract_strided_slice %214 {offsets = [0, 128], sizes = [8, 128], strides = [1, 1]} : vector<8x512xf32> to vector<8x128xf32>
    %222 = arith.negf %221 : vector<8x128xf32>
    %223 = math.exp %222 : vector<8x128xf32>
    %cst_58 = arith.constant 1.000000e+00 : f32
    %224 = vector.broadcast %cst_58 : f32 to vector<8x128xf32>
    %225 = arith.addf %224, %223 : vector<8x128xf32>
    %226 = arith.divf %224, %225 : vector<8x128xf32>
    %227 = vector.extract_strided_slice %214 {offsets = [0, 256], sizes = [8, 128], strides = [1, 1]} : vector<8x512xf32> to vector<8x128xf32>
    %228 = math.tanh %227 : vector<8x128xf32>
    %229 = vector.extract_strided_slice %214 {offsets = [0, 384], sizes = [8, 128], strides = [1, 1]} : vector<8x512xf32> to vector<8x128xf32>
    %230 = arith.negf %229 : vector<8x128xf32>
    %231 = math.exp %230 : vector<8x128xf32>
    %cst_59 = arith.constant 1.000000e+00 : f32
    %232 = vector.broadcast %cst_59 : f32 to vector<8x128xf32>
    %233 = arith.addf %232, %231 : vector<8x128xf32>
    %234 = arith.divf %232, %233 : vector<8x128xf32>
    %235 = arith.mulf %226, %203 : vector<8x128xf32>
    %236 = arith.mulf %220, %228 : vector<8x128xf32>
    %237 = arith.addf %235, %236 : vector<8x128xf32>
    %238 = math.tanh %237 : vector<8x128xf32>
    %239 = arith.mulf %234, %238 : vector<8x128xf32>
    %240 = arith.index_cast %c6_i32 : i32 to index
    %c0_60 = arith.constant 0 : index
    %c0_61 = arith.constant 0 : index
    %241 = vector.load %arg6[%240, %c0_60, %c0_61] : memref<8x8x128xf32, #tpu.memory_space<vmem>>, vector<1x8x128xf32>
    %242 = vector.shape_cast %241 : vector<1x8x128xf32> to vector<8x128xf32>
    %243 = vector.shape_cast %239 : vector<8x128xf32> to vector<1x8x128xf32>
    tpu.vector_store %arg6[%240, %c0_60, %c0_61], %243 {strides = array<i32>} : memref<8x8x128xf32, #tpu.memory_space<vmem>>, vector<1x8x128xf32>,
    %c7_i32 = arith.constant 7 : i32
    %244 = arith.index_cast %c7_i32 : i32 to index
    %c0_62 = arith.constant 0 : index
    %c0_63 = arith.constant 0 : index
    %245 = vector.load %arg2[%244, %c0_62, %c0_63] : memref<8x8x512xf32, #tpu.memory_space<vmem>>, vector<1x8x512xf32>
    %246 = vector.shape_cast %245 : vector<1x8x512xf32> to vector<8x512xf32>
    %cst_64 = arith.constant dense<0.000000e+00> : vector<8x512xf32>
    %247 = tpu.matmul %239, %3, %cst_64 {dimension_numbers = #tpu.dot_dimension_numbers<[1], [0], [0], [1], [0, 0, 1, 1], [], []>} : vector<8x128xf32>, vector<128x512xf32>, vector<8x512xf32> -> vector<8x512xf32>
    %248 = arith.addf %246, %247 : vector<8x512xf32>
    %249 = vector.extract_strided_slice %248 {offsets = [0, 0], sizes = [8, 128], strides = [1, 1]} : vector<8x512xf32> to vector<8x128xf32>
    %250 = arith.negf %249 : vector<8x128xf32>
    %251 = math.exp %250 : vector<8x128xf32>
    %cst_65 = arith.constant 1.000000e+00 : f32
    %252 = vector.broadcast %cst_65 : f32 to vector<8x128xf32>
    %253 = arith.addf %252, %251 : vector<8x128xf32>
    %254 = arith.divf %252, %253 : vector<8x128xf32>
    %255 = vector.extract_strided_slice %248 {offsets = [0, 128], sizes = [8, 128], strides = [1, 1]} : vector<8x512xf32> to vector<8x128xf32>
    %256 = arith.negf %255 : vector<8x128xf32>
    %257 = math.exp %256 : vector<8x128xf32>
    %cst_66 = arith.constant 1.000000e+00 : f32
    %258 = vector.broadcast %cst_66 : f32 to vector<8x128xf32>
    %259 = arith.addf %258, %257 : vector<8x128xf32>
    %260 = arith.divf %258, %259 : vector<8x128xf32>
    %261 = vector.extract_strided_slice %248 {offsets = [0, 256], sizes = [8, 128], strides = [1, 1]} : vector<8x512xf32> to vector<8x128xf32>
    %262 = math.tanh %261 : vector<8x128xf32>
    %263 = vector.extract_strided_slice %248 {offsets = [0, 384], sizes = [8, 128], strides = [1, 1]} : vector<8x512xf32> to vector<8x128xf32>
    %264 = arith.negf %263 : vector<8x128xf32>
    %265 = math.exp %264 : vector<8x128xf32>
    %cst_67 = arith.constant 1.000000e+00 : f32
    %266 = vector.broadcast %cst_67 : f32 to vector<8x128xf32>
    %267 = arith.addf %266, %265 : vector<8x128xf32>
    %268 = arith.divf %266, %267 : vector<8x128xf32>
    %269 = arith.mulf %260, %237 : vector<8x128xf32>
    %270 = arith.mulf %254, %262 : vector<8x128xf32>
    %271 = arith.addf %269, %270 : vector<8x128xf32>
    %272 = math.tanh %271 : vector<8x128xf32>
    %273 = arith.mulf %268, %272 : vector<8x128xf32>
    %274 = arith.index_cast %c7_i32 : i32 to index
    %c0_68 = arith.constant 0 : index
    %c0_69 = arith.constant 0 : index
    %275 = vector.load %arg6[%274, %c0_68, %c0_69] : memref<8x8x128xf32, #tpu.memory_space<vmem>>, vector<1x8x128xf32>
    %276 = vector.shape_cast %275 : vector<1x8x128xf32> to vector<8x128xf32>
    %277 = vector.shape_cast %273 : vector<8x128xf32> to vector<1x8x128xf32>
    tpu.vector_store %arg6[%274, %c0_68, %c0_69], %277 {strides = array<i32>} : memref<8x8x128xf32, #tpu.memory_space<vmem>>, vector<1x8x128xf32>,
    %c8_i32 = arith.constant 8 : i32
    %c0_70 = arith.constant 0 : index
    %c0_71 = arith.constant 0 : index
    %278 = vector.load %arg8[%c0_70, %c0_71] : memref<8x128xf32, #tpu.memory_space<vmem>>, vector<8x128xf32>
    tpu.vector_store %arg8[%c0_70, %c0_71], %273 {strides = array<i32>} : memref<8x128xf32, #tpu.memory_space<vmem>>, vector<8x128xf32>,
    %c0_72 = arith.constant 0 : index
    %c0_73 = arith.constant 0 : index
    %279 = vector.load %arg9[%c0_72, %c0_73] : memref<8x128xf32, #tpu.memory_space<vmem>>, vector<8x128xf32>
    tpu.vector_store %arg9[%c0_72, %c0_73], %271 {strides = array<i32>} : memref<8x128xf32, #tpu.memory_space<vmem>>, vector<8x128xf32>,
    %c0_i32_74 = arith.constant 0 : i32
    %280 = arith.cmpi eq, %arg1, %c0_i32_74 : i32
    %281 = arith.extui %280 : i1 to i32
    %c0_i32_75 = arith.constant 0 : i32
    %282 = arith.cmpi ne, %281, %c0_i32_75 : i32
    scf.if %282 {
      %c0_76 = arith.constant 0 : index
      %c0_77 = arith.constant 0 : index
      %283 = vector.load %arg7[%c0_76, %c0_77] : memref<8x128xf32, #tpu.memory_space<vmem>>, vector<8x128xf32>
      tpu.vector_store %arg7[%c0_76, %c0_77], %271 {strides = array<i32>} : memref<8x128xf32, #tpu.memory_space<vmem>>, vector<8x128xf32>,
    } else {
    }
    return
  }
  func.func @transform_0(%arg0: i32, %arg1: i32) -> (i32, i32, i32) {
    %c0_i32 = arith.constant 0 : i32
    %c0_i32_0 = arith.constant 0 : i32
    return %arg1, %arg0, %c0_i32 : i32, i32, i32
  }
  func.func @transform_1(%arg0: i32, %arg1: i32) -> (i32, i32) {
    %c0_i32 = arith.constant 0 : i32
    %c0_i32_0 = arith.constant 0 : i32
    %c0_i32_1 = arith.constant 0 : i32
    return %c0_i32, %c0_i32_0 : i32, i32
  }
  func.func @transform_2(%arg0: i32, %arg1: i32) -> (i32, i32) {
    %c0_i32 = arith.constant 0 : i32
    %c0_i32_0 = arith.constant 0 : i32
    return %arg0, %c0_i32 : i32, i32
  }
  func.func @transform_3(%arg0: i32, %arg1: i32) -> (i32, i32) {
    %c0_i32 = arith.constant 0 : i32
    %c0_i32_0 = arith.constant 0 : i32
    return %arg0, %c0_i32 : i32, i32
  }
  func.func @transform_4(%arg0: i32, %arg1: i32) -> (i32, i32, i32) {
    %c0_i32 = arith.constant 0 : i32
    %c0_i32_0 = arith.constant 0 : i32
    return %arg1, %arg0, %c0_i32 : i32, i32, i32
  }
  func.func @transform_5(%arg0: i32, %arg1: i32) -> (i32, i32) {
    %c0_i32 = arith.constant 0 : i32
    %c0_i32_0 = arith.constant 0 : i32
    return %arg0, %c0_i32 : i32, i32
  }
}

</mosaic_0001>

<llo_original>
// kernel: tpu_custom_call.1
$region0: #{tpu_custom_call.1}
  #allocation0 [shape = 'u32[]', space=smem, size = 0x4, offset = 0x4, fixed_abs, tag = 'smem constant byte address 0x4 - core index']
  #allocation1 [shape = 'u32[144,128]{1,0:T(1,128)}', space=vmem, size = 0x12000, scoped, tag = 'internal scratch']
  #allocation2 [shape = 'f32[8,128]{1,0:T(8,128)}', space=vmem, size = 0x1000, scoped, tag = 'scratch operand']
  #allocation3 [shape = 'f32[8,128]{1,0:T(8,128)}', space=vmem, size = 0x1000, scoped, tag = 'scratch operand']
  %s0 = inlined_call_operand.hbm [shape: f32[8,8,512], index: 0, kind: input, shape index: {}]
  %s1 = inlined_call_operand.hbm [shape: f32[128,512], index: 1, kind: input, shape index: {}]
  %s2 = inlined_call_operand.hbm [shape: f32[8,128], index: 2, kind: input, shape index: {}]
  %s3 = inlined_call_operand.vmem [shape: f32[8,128], index: 3, kind: input, shape index: {}]
  %s4 = inlined_call_operand.hbm [shape: f32[8,8,128], index: 4, kind: output, shape index: {0}]
  %s5 = inlined_call_operand.hbm [shape: f32[8,128], index: 5, kind: output, shape index: {1}]
  %6 = xla_tuple %s4, %s5
  %s7 = sld [smem:[#allocation0]]
  $region54: #{tpu_custom_call.1} parent=0
    _
  %s9 = ssub.s32 1, %s7
  %s10 = scalar_select 0, %s9, %s7
  $region1: #{tpu_custom_call.1} parent=0
    #allocation4 [shape = 'u8[131072]{0}', space=vmem, size = 0x20000, scoped, tag = 'input window, operand 0, single buffered']
    #allocation5 [shape = 's32[1]{0}', space=sflag, size = 0x4, scoped, tag = 'scoped memory for tpu_custom_call.1']
    #allocation6 [shape = 's32[1]{0}', space=sflag, size = 0x4, scoped, tag = 'scoped memory for tpu_custom_call.1']
    #allocation7 [shape = 'u8[262144]{0}', space=vmem, size = 0x40000, scoped, tag = 'input window, operand 1, single buffered']
    #allocation8 [shape = 's32[1]{0}', space=sflag, size = 0x4, scoped, tag = 'scoped memory for tpu_custom_call.1']
    #allocation9 [shape = 'u8[4096]{0}', space=vmem, size = 0x1000, scoped, tag = 'input window, operand 2, single buffered']
    #allocation10 [shape = 'u8[32768]{0}', space=vmem, size = 0x8000, scoped, tag = 'output window, operand 0, single buffered']
    #allocation11 [shape = 'u8[4096]{0}', space=vmem, size = 0x1000, scoped, tag = 'output window, operand 1, single buffered']
    #allocation12 [shape = 's32[1]{0}', space=sflag, size = 0x4, scoped, tag = 'scoped memory for tpu_custom_call.1']
    %11 = vsyncpa [#allocation5], 0
    %12 = vsyncpa [#allocation8], 0
    %13 = vsyncpa [#allocation6], 0
    %14 = vsyncpa [#allocation12], 0
    // Predicated region
    $region2: #{tpu_custom_call.1} parent=1 // pred_check
      _
    $region3: #{tpu_custom_call.1} parent=1 // pred_check_branch
      %16 = sbr.rel (0) target = $region5
    $region4: #{tpu_custom_call.1} parent=1 // pred_region
      %s18 = ssub.s32 4096, 4096
      %19 = vsyncadd [#allocation5], %s18
      %s20 = sshll.u32 [#allocation4], 4
      %s21 = int_to_ptr.vmem [resolvable:$true] %s20
      %26 = dma.hbm_to_vmem [thread:$0]  %s0, 4096, %s21, [#allocation5], 512, 512, 32
    $region5: #{tpu_custom_call.1} parent=1 // pred_fallthru
      _
    // Predicated region
    $region6: #{tpu_custom_call.1} parent=1 // pred_check
      _
    $region7: #{tpu_custom_call.1} parent=1 // pred_check_branch
      %28 = sbr.rel (0) target = $region9
    $region8: #{tpu_custom_call.1} parent=1 // pred_region
      %s30 = ssub.s32 8192, 8192
      %31 = vsyncadd [#allocation8], %s30
      %s32 = sshll.u32 [#allocation7], 4
      %s33 = int_to_ptr.vmem [resolvable:$true] %s32
      %38 = dma.hbm_to_vmem [thread:$0]  %s1, 8192, %s33, [#allocation8], 512, 512, 32
    $region9: #{tpu_custom_call.1} parent=1 // pred_fallthru
      _
    // Predicated region
    $region10: #{tpu_custom_call.1} parent=1 // pred_check
      _
    $region11: #{tpu_custom_call.1} parent=1 // pred_check_branch
      %40 = sbr.rel (0) target = $region13
    $region12: #{tpu_custom_call.1} parent=1 // pred_region
      %s42 = ssub.s32 128, 128
      %43 = vsyncadd [#allocation8], %s42
      %s45 = sshll.u32 [#allocation9], 4
      %s46 = int_to_ptr.vmem [resolvable:$true] %s45
      %48 = dma.hbm_to_vmem [thread:$0]  %s2, 128, %s46, [#allocation8]
    $region13: #{tpu_custom_call.1} parent=1 // pred_fallthru
      _
    // Predicated region
    $region14: #{tpu_custom_call.1} parent=1 // pred_check
      _
    $region15: #{tpu_custom_call.1} parent=1 // pred_check_branch
      %50 = sbr.rel (0) target = $region17
    $region16: #{tpu_custom_call.1} parent=1 // pred_region
      _
    $region17: #{tpu_custom_call.1} parent=1 // pred_fallthru
      _
    // Predicated region
    $region18: #{tpu_custom_call.1} parent=1 // pred_check
      _
    $region19: #{tpu_custom_call.1} parent=1 // pred_check_branch
      %52 = sbr.rel (0) target = $region21
    $region20: #{tpu_custom_call.1} parent=1 // pred_region
      %53 = dma.done [#allocation5], 4096
    $region21: #{tpu_custom_call.1} parent=1 // pred_fallthru
      _
    // Predicated region
    $region22: #{tpu_custom_call.1} parent=1 // pred_check
      _
    $region23: #{tpu_custom_call.1} parent=1 // pred_check_branch
      %55 = sbr.rel (0) target = $region25
    $region24: #{tpu_custom_call.1} parent=1 // pred_region
      %56 = dma.done [#allocation8], 8192
    $region25: #{tpu_custom_call.1} parent=1 // pred_fallthru
      _
    // Predicated region
    $region26: #{tpu_custom_call.1} parent=1 // pred_check
      _
    $region27: #{tpu_custom_call.1} parent=1 // pred_check_branch
      %58 = sbr.rel (0) target = $region29
    $region28: #{tpu_custom_call.1} parent=1 // pred_region
      %59 = dma.done [#allocation8], 128
    $region29: #{tpu_custom_call.1} parent=1 // pred_fallthru
      _
    %p60 = scmp.eq.s32.totalorder 0, 0
    // Predicated region
    $region30: #{tpu_custom_call.1} parent=1 // pred_check
      %p61 = pneg %p60
    $region31: #{tpu_custom_call.1} parent=1 // pred_check_branch
      %63 = sbr.rel (%p61) target = $region33
    $region32: #{tpu_custom_call.1} parent=1 // pred_region
      %v64 = vld [vmem:[#allocation9] sm:$0xff]
      %65 = vst [vmem:[#allocation2] sm:$0xff] %v64
      %v66 = vld [vmem:[%s3] sm:$0xff]
      %67 = vst [vmem:[#allocation3] sm:$0xff] %v66
    $region33: #{tpu_custom_call.1} parent=1 // pred_fallthru
      _
    %v68 = vld [vmem:[#allocation7] sm:$0xff]
    %v69 = vld [vmem:[#allocation7 + $0x8] sm:$0xff]
    %v70 = vld [vmem:[#allocation7 + $0x10] sm:$0xff]
    %v71 = vld [vmem:[#allocation7 + $0x18] sm:$0xff]
    %v72 = vld [vmem:[#allocation7 + $0x20] sm:$0xff]
    %v73 = vld [vmem:[#allocation7 + $0x28] sm:$0xff]
    %v74 = vld [vmem:[#allocation7 + $0x30] sm:$0xff]
    %v75 = vld [vmem:[#allocation7 + $0x38] sm:$0xff]
    %v76 = vld [vmem:[#allocation7 + $0x40] sm:$0xff]
    %v77 = vld [vmem:[#allocation7 + $0x48] sm:$0xff]
    %v78 = vld [vmem:[#allocation7 + $0x50] sm:$0xff]
    %v79 = vld [vmem:[#allocation7 + $0x58] sm:$0xff]
    %v80 = vld [vmem:[#allocation7 + $0x60] sm:$0xff]
    %v81 = vld [vmem:[#allocation7 + $0x68] sm:$0xff]
    %v82 = vld [vmem:[#allocation7 + $0x70] sm:$0xff]
    %v83 = vld [vmem:[#allocation7 + $0x78] sm:$0xff]
    %v84 = vld [vmem:[#allocation7 + $0x80] sm:$0xff]
    %v85 = vld [vmem:[#allocation7 + $0x88] sm:$0xff]
    %v86 = vld [vmem:[#allocation7 + $0x90] sm:$0xff]
    %v87 = vld [vmem:[#allocation7 + $0x98] sm:$0xff]
    %v88 = vld [vmem:[#allocation7 + $0xa0] sm:$0xff]
    %v89 = vld [vmem:[#allocation7 + $0xa8] sm:$0xff]
    %v90 = vld [vmem:[#allocation7 + $0xb0] sm:$0xff]
    %v91 = vld [vmem:[#allocation7 + $0xb8] sm:$0xff]
    %v92 = vld [vmem:[#allocation7 + $0xc0] sm:$0xff]
    %v93 = vld [vmem:[#allocation7 + $0xc8] sm:$0xff]
    %v94 = vld [vmem:[#allocation7 + $0xd0] sm:$0xff]
    %v95 = vld [vmem:[#allocation7 + $0xd8] sm:$0xff]
    %v96 = vld [vmem:[#allocation7 + $0xe0] sm:$0xff]
    %v97 = vld [vmem:[#allocation7 + $0xe8] sm:$0xff]
    %v98 = vld [vmem:[#allocation7 + $0xf0] sm:$0xff]
    %v99 = vld [vmem:[#allocation7 + $0xf8] sm:$0xff]
    %v100 = vld [vmem:[#allocation7 + $0x100] sm:$0xff]
    %v101 = vld [vmem:[#allocation7 + $0x108] sm:$0xff]
    %v102 = vld [vmem:[#allocation7 + $0x110] sm:$0xff]
    %v103 = vld [vmem:[#allocation7 + $0x118] sm:$0xff]
    %v104 = vld [vmem:[#allocation7 + $0x120] sm:$0xff]
    %v105 = vld [vmem:[#allocation7 + $0x128] sm:$0xff]
    %v106 = vld [vmem:[#allocation7 + $0x130] sm:$0xff]
    %v107 = vld [vmem:[#allocation7 + $0x138] sm:$0xff]
    %v108 = vld [vmem:[#allocation7 + $0x140] sm:$0xff]
    %v109 = vld [vmem:[#allocation7 + $0x148] sm:$0xff]
    %v110 = vld [vmem:[#allocation7 + $0x150] sm:$0xff]
    %v111 = vld [vmem:[#allocation7 + $0x158] sm:$0xff]
    %v112 = vld [vmem:[#allocation7 + $0x160] sm:$0xff]
    %v113 = vld [vmem:[#allocation7 + $0x168] sm:$0xff]
    %v114 = vld [vmem:[#allocation7 + $0x170] sm:$0xff]
    %v115 = vld [vmem:[#allocation7 + $0x178] sm:$0xff]
    %v116 = vld [vmem:[#allocation7 + $0x180] sm:$0xff]
    %v117 = vld [vmem:[#allocation7 + $0x188] sm:$0xff]
    %v118 = vld [vmem:[#allocation7 + $0x190] sm:$0xff]
    %v119 = vld [vmem:[#allocation7 + $0x198] sm:$0xff]
    %v120 = vld [vmem:[#allocation7 + $0x1a0] sm:$0xff]
    %v121 = vld [vmem:[#allocation7 + $0x1a8] sm:$0xff]
    %v122 = vld [vmem:[#allocation7 + $0x1b0] sm:$0xff]
    %v123 = vld [vmem:[#allocation7 + $0x1b8] sm:$0xff]
    %v124 = vld [vmem:[#allocation7 + $0x1c0] sm:$0xff]
    %v125 = vld [vmem:[#allocation7 + $0x1c8] sm:$0xff]
    %v126 = vld [vmem:[#allocation7 + $0x1d0] sm:$0xff]
    %v127 = vld [vmem:[#allocation7 + $0x1d8] sm:$0xff]
    %v128 = vld [vmem:[#allocation7 + $0x1e0] sm:$0xff]
    %v129 = vld [vmem:[#allocation7 + $0x1e8] sm:$0xff]
    %v130 = vld [vmem:[#allocation7 + $0x1f0] sm:$0xff]
    %v131 = vld [vmem:[#allocation7 + $0x1f8] sm:$0xff]
    %v132 = vld [vmem:[#allocation2] sm:$0xff]
    %v133 = vld [vmem:[#allocation3] sm:$0xff]
    %v134 = vld [vmem:[#allocation4] sm:$0xff]
    %v135 = vld [vmem:[#allocation4 + $0x8] sm:$0xff]
    %v136 = vld [vmem:[#allocation4 + $0x10] sm:$0xff]
    %v137 = vld [vmem:[#allocation4 + $0x18] sm:$0xff]
    %138 = vmatprep.subr.mxu0 %v69
    %139 = vmatpush1.msra.mxu0 %v68
    %140 = vmatprep.subr.mxu0 %v73
    %141 = vmatpush1.msra.mxu0 %v72
    %142 = vmatprep.subr.mxu0 %v77
    %143 = vmatpush1.msra.mxu0 %v76
    %144 = vmatprep.subr.mxu0 %v81
    %145 = vmatpush1.msra.mxu0 %v80
    %146 = vmatprep.subr.mxu0 %v85
    %147 = vmatpush1.msra.mxu0 %v84
    %148 = vmatprep.subr.mxu0 %v89
    %149 = vmatpush1.msra.mxu0 %v88
    %150 = vmatprep.subr.mxu0 %v93
    %151 = vmatpush1.msra.mxu0 %v92
    %152 = vmatprep.subr.mxu0 %v97
    %153 = vmatpush1.msra.mxu0 %v96
    %154 = vmatprep.subr.mxu0 %v101
    %155 = vmatpush1.msra.mxu0 %v100
    %156 = vmatprep.subr.mxu0 %v105
    %157 = vmatpush1.msra.mxu0 %v104
    %158 = vmatprep.subr.mxu0 %v109
    %159 = vmatpush1.msra.mxu0 %v108
    %160 = vmatprep.subr.mxu0 %v113
    %161 = vmatpush1.msra.mxu0 %v112
    %162 = vmatprep.subr.mxu0 %v117
    %163 = vmatpush1.msra.mxu0 %v116
    %164 = vmatprep.subr.mxu0 %v121
    %165 = vmatpush1.msra.mxu0 %v120
    %166 = vmatprep.subr.mxu0 %v125
    %167 = vmatpush1.msra.mxu0 %v124
    %168 = vmatprep.subr.mxu0 %v129
    %169 = vmatpush1.msra.mxu0 %v128
    %170 = vmatprep.subr.mxu0 0.0
    %171 = vmatpush1.msra.mxu0 0.0
    %172 = vmatprep.subr.mxu0 0.0
    %173 = vmatpush1.msra.mxu0 0.0
    %174 = vmatprep.subr.mxu0 0.0
    %175 = vmatpush1.msra.mxu0 0.0
    %176 = vmatprep.subr.mxu0 0.0
    %177 = vmatpush1.msra.mxu0 0.0
    %178 = vmatprep.subr.mxu0 0.0
    %179 = vmatpush1.msra.mxu0 0.0
    %180 = vmatprep.subr.mxu0 0.0
    %181 = vmatpush1.msra.mxu0 0.0
    %182 = vmatprep.subr.mxu0 0.0
    %183 = vmatpush1.msra.mxu0 0.0
    %184 = vmatprep.subr.mxu0 0.0
    %185 = vmatpush1.msra.mxu0 0.0
    %186 = vmatprep.subr.mxu0 0.0
    %187 = vmatpush1.msra.mxu0 0.0
    %188 = vmatprep.subr.mxu0 0.0
    %189 = vmatpush1.msra.mxu0 0.0
    %190 = vmatprep.subr.mxu0 0.0
    %191 = vmatpush1.msra.mxu0 0.0
    %192 = vmatprep.subr.mxu0 0.0
    %193 = vmatpush1.msra.mxu0 0.0
    %194 = vmatprep.subr.mxu0 0.0
    %195 = vmatpush1.msra.mxu0 0.0
    %196 = vmatprep.subr.mxu0 0.0
    %197 = vmatpush1.msra.mxu0 0.0
    %198 = vmatprep.subr.mxu0 0.0
    %199 = vmatpush1.msra.mxu0 0.0
    %200 = vmatprep.subr.mxu0 0.0
    %201 = vmatpush1.msra.mxu0 0.0
    %202 = vmatprep.mubr.f32.mxu0 0.0
    %203 = vmatmul.mubr.f32.gmra.mrb[0].mxu0 %v132
    %v204 = vpop.f32.mrb[0].mxu0
    %v205 = vadd.f32 0.0, %v204
    %v206 = vpop.f32.mrb[0].mxu0
    %v207 = vadd.f32 0.0, %v206
    %208 = vdwg.mxu0
    %209 = vmatprep.subr.mxu0 %v71
    %210 = vmatpush1.msra.mxu0 %v70
    %211 = vmatprep.subr.mxu0 %v75
    %212 = vmatpush1.msra.mxu0 %v74
    %213 = vmatprep.subr.mxu0 %v79
    %214 = vmatpush1.msra.mxu0 %v78
    %215 = vmatprep.subr.mxu0 %v83
    %216 = vmatpush1.msra.mxu0 %v82
    %217 = vmatprep.subr.mxu0 %v87
    %218 = vmatpush1.msra.mxu0 %v86
    %219 = vmatprep.subr.mxu0 %v91
    %220 = vmatpush1.msra.mxu0 %v90
    %221 = vmatprep.subr.mxu0 %v95
    %222 = vmatpush1.msra.mxu0 %v94
    %223 = vmatprep.subr.mxu0 %v99
    %224 = vmatpush1.msra.mxu0 %v98
    %225 = vmatprep.subr.mxu0 %v103
    %226 = vmatpush1.msra.mxu0 %v102
    %227 = vmatprep.subr.mxu0 %v107
    %228 = vmatpush1.msra.mxu0 %v106
    %229 = vmatprep.subr.mxu0 %v111
    %230 = vmatpush1.msra.mxu0 %v110
    %231 = vmatprep.subr.mxu0 %v115
    %232 = vmatpush1.msra.mxu0 %v114
    %233 = vmatprep.subr.mxu0 %v119
    %234 = vmatpush1.msra.mxu0 %v118
    %235 = vmatprep.subr.mxu0 %v123
    %236 = vmatpush1.msra.mxu0 %v122
    %237 = vmatprep.subr.mxu0 %v127
    %238 = vmatpush1.msra.mxu0 %v126
    %239 = vmatprep.subr.mxu0 %v131
    %240 = vmatpush1.msra.mxu0 %v130
    %241 = vmatprep.subr.mxu0 0.0
    %242 = vmatpush1.msra.mxu0 0.0
    %243 = vmatprep.subr.mxu0 0.0
    %244 = vmatpush1.msra.mxu0 0.0
    %245 = vmatprep.subr.mxu0 0.0
    %246 = vmatpush1.msra.mxu0 0.0
    %247 = vmatprep.subr.mxu0 0.0
    %248 = vmatpush1.msra.mxu0 0.0
    %249 = vmatprep.subr.mxu0 0.0
    %250 = vmatpush1.msra.mxu0 0.0
    %251 = vmatprep.subr.mxu0 0.0
    %252 = vmatpush1.msra.mxu0 0.0
    %253 = vmatprep.subr.mxu0 0.0
    %254 = vmatpush1.msra.mxu0 0.0
    %255 = vmatprep.subr.mxu0 0.0
    %256 = vmatpush1.msra.mxu0 0.0
    %257 = vmatprep.subr.mxu0 0.0
    %258 = vmatpush1.msra.mxu0 0.0
    %259 = vmatprep.subr.mxu0 0.0
    %260 = vmatpush1.msra.mxu0 0.0
    %261 = vmatprep.subr.mxu0 0.0
    %262 = vmatpush1.msra.mxu0 0.0
    %263 = vmatprep.subr.mxu0 0.0
    %264 = vmatpush1.msra.mxu0 0.0
    %265 = vmatprep.subr.mxu0 0.0
    %266 = vmatpush1.msra.mxu0 0.0
    %267 = vmatprep.subr.mxu0 0.0
    %268 = vmatpush1.msra.mxu0 0.0
    %269 = vmatprep.subr.mxu0 0.0
    %270 = vmatpush1.msra.mxu0 0.0
    %271 = vmatprep.subr.mxu0 0.0
    %272 = vmatpush1.msra.mxu0 0.0
    %273 = vmatprep.mubr.f32.mxu0 0.0
    %274 = vmatmul.mubr.f32.gmra.mrb[0].mxu0 %v132
    %v275 = vpop.f32.mrb[0].mxu0
    %v276 = vadd.f32 0.0, %v275
    %v277 = vpop.f32.mrb[0].mxu0
    %v278 = vadd.f32 0.0, %v277
    %279 = vdwg.mxu0
    %v280 = vadd.f32 %v134, %v205
    %v281 = vadd.f32 %v135, %v207
    %v282 = vadd.f32 %v136, %v276
    %v283 = vadd.f32 %v137, %v278
    %v284 = vxor.u32 %v280, 2147483648
    %v285 = vmul.f32 %v284, 1.442695
    %v286 = vpow.pop %v285
    %v287 = vadd.f32 %v286, 1.0
    %v288 = vrcp.pop %v287
    %v289 = vmul.f32 1.0, %v288
    %v290 = vxor.u32 %v281, 2147483648
    %v291 = vmul.f32 %v290, 1.442695
    %v292 = vpow.pop %v291
    %v293 = vadd.f32 %v292, 1.0
    %v294 = vrcp.pop %v293
    %v295 = vmul.f32 1.0, %v294
    %v296 = vtanh.pop %v282
    %v297 = vxor.u32 %v283, 2147483648
    %v298 = vmul.f32 %v297, 1.442695
    %v299 = vpow.pop %v298
    %v300 = vadd.f32 %v299, 1.0
    %v301 = vrcp.pop %v300
    %v302 = vmul.f32 1.0, %v301
    %v303 = vmul.f32 %v295, %v133
    %v304 = vmul.f32 %v289, %v296
    %v305 = vadd.f32 %v303, %v304
    %v306 = vtanh.pop %v305
    %v307 = vmul.f32 %v302, %v306
    %308 = vst [vmem:[#allocation10] sm:$0xff] %v307
    %s309 = scalar_lea.vmem [#allocation4], 32
    %v310 = vld [vmem:[%s309] sm:$0xff]
    %v311 = vld [vmem:[%s309 + $0x8] sm:$0xff]
    %v312 = vld [vmem:[%s309 + $0x10] sm:$0xff]
    %v313 = vld [vmem:[%s309 + $0x18] sm:$0xff]
    %314 = vmatprep.subr.mxu0 %v69
    %315 = vmatpush1.msra.mxu0 %v68
    %316 = vmatprep.subr.mxu0 %v73
    %317 = vmatpush1.msra.mxu0 %v72
    %318 = vmatprep.subr.mxu0 %v77
    %319 = vmatpush1.msra.mxu0 %v76
    %320 = vmatprep.subr.mxu0 %v81
    %321 = vmatpush1.msra.mxu0 %v80
    %322 = vmatprep.subr.mxu0 %v85
    %323 = vmatpush1.msra.mxu0 %v84
    %324 = vmatprep.subr.mxu0 %v89
    %325 = vmatpush1.msra.mxu0 %v88
    %326 = vmatprep.subr.mxu0 %v93
    %327 = vmatpush1.msra.mxu0 %v92
    %328 = vmatprep.subr.mxu0 %v97
    %329 = vmatpush1.msra.mxu0 %v96
    %330 = vmatprep.subr.mxu0 %v101
    %331 = vmatpush1.msra.mxu0 %v100
    %332 = vmatprep.subr.mxu0 %v105
    %333 = vmatpush1.msra.mxu0 %v104
    %334 = vmatprep.subr.mxu0 %v109
    %335 = vmatpush1.msra.mxu0 %v108
    %336 = vmatprep.subr.mxu0 %v113
    %337 = vmatpush1.msra.mxu0 %v112
    %338 = vmatprep.subr.mxu0 %v117
    %339 = vmatpush1.msra.mxu0 %v116
    %340 = vmatprep.subr.mxu0 %v121
    %341 = vmatpush1.msra.mxu0 %v120
    %342 = vmatprep.subr.mxu0 %v125
    %343 = vmatpush1.msra.mxu0 %v124
    %344 = vmatprep.subr.mxu0 %v129
    %345 = vmatpush1.msra.mxu0 %v128
    %346 = vmatprep.subr.mxu0 0.0
    %347 = vmatpush1.msra.mxu0 0.0
    %348 = vmatprep.subr.mxu0 0.0
    %349 = vmatpush1.msra.mxu0 0.0
    %350 = vmatprep.subr.mxu0 0.0
    %351 = vmatpush1.msra.mxu0 0.0
    %352 = vmatprep.subr.mxu0 0.0
    %353 = vmatpush1.msra.mxu0 0.0
    %354 = vmatprep.subr.mxu0 0.0
    %355 = vmatpush1.msra.mxu0 0.0
    %356 = vmatprep.subr.mxu0 0.0
    %357 = vmatpush1.msra.mxu0 0.0
    %358 = vmatprep.subr.mxu0 0.0
    %359 = vmatpush1.msra.mxu0 0.0
    %360 = vmatprep.subr.mxu0 0.0
    %361 = vmatpush1.msra.mxu0 0.0
    %362 = vmatprep.subr.mxu0 0.0
    %363 = vmatpush1.msra.mxu0 0.0
    %364 = vmatprep.subr.mxu0 0.0
    %365 = vmatpush1.msra.mxu0 0.0
    %366 = vmatprep.subr.mxu0 0.0
    %367 = vmatpush1.msra.mxu0 0.0
    %368 = vmatprep.subr.mxu0 0.0
    %369 = vmatpush1.msra.mxu0 0.0
    %370 = vmatprep.subr.mxu0 0.0
    %371 = vmatpush1.msra.mxu0 0.0
    %372 = vmatprep.subr.mxu0 0.0
    %373 = vmatpush1.msra.mxu0 0.0
    %374 = vmatprep.subr.mxu0 0.0
    %375 = vmatpush1.msra.mxu0 0.0
    %376 = vmatprep.subr.mxu0 0.0
    %377 = vmatpush1.msra.mxu0 0.0
    %378 = vmatprep.mubr.f32.mxu0 0.0
    %379 = vmatmul.mubr.f32.gmra.mrb[0].mxu0 %v307
    %v380 = vpop.f32.mrb[0].mxu0
    %v381 = vadd.f32 0.0, %v380
    %v382 = vpop.f32.mrb[0].mxu0
    %v383 = vadd.f32 0.0, %v382
    %384 = vdwg.mxu0
    %385 = vmatprep.subr.mxu0 %v71
    %386 = vmatpush1.msra.mxu0 %v70
    %387 = vmatprep.subr.mxu0 %v75
    %388 = vmatpush1.msra.mxu0 %v74
    %389 = vmatprep.subr.mxu0 %v79
    %390 = vmatpush1.msra.mxu0 %v78
    %391 = vmatprep.subr.mxu0 %v83
    %392 = vmatpush1.msra.mxu0 %v82
    %393 = vmatprep.subr.mxu0 %v87
    %394 = vmatpush1.msra.mxu0 %v86
    %395 = vmatprep.subr.mxu0 %v91
    %396 = vmatpush1.msra.mxu0 %v90
    %397 = vmatprep.subr.mxu0 %v95
    %398 = vmatpush1.msra.mxu0 %v94
    %399 = vmatprep.subr.mxu0 %v99
    %400 = vmatpush1.msra.mxu0 %v98
    %401 = vmatprep.subr.mxu0 %v103
    %402 = vmatpush1.msra.mxu0 %v102
    %403 = vmatprep.subr.mxu0 %v107
    %404 = vmatpush1.msra.mxu0 %v106
    %405 = vmatprep.subr.mxu0 %v111
    %406 = vmatpush1.msra.mxu0 %v110
    %407 = vmatprep.subr.mxu0 %v115
    %408 = vmatpush1.msra.mxu0 %v114
    %409 = vmatprep.subr.mxu0 %v119
    %410 = vmatpush1.msra.mxu0 %v118
    %411 = vmatprep.subr.mxu0 %v123
    %412 = vmatpush1.msra.mxu0 %v122
    %413 = vmatprep.subr.mxu0 %v127
    %414 = vmatpush1.msra.mxu0 %v126
    %415 = vmatprep.subr.mxu0 %v131
    %416 = vmatpush1.msra.mxu0 %v130
    %417 = vmatprep.subr.mxu0 0.0
    %418 = vmatpush1.msra.mxu0 0.0
    %419 = vmatprep.subr.mxu0 0.0
    %420 = vmatpush1.msra.mxu0 0.0
    %421 = vmatprep.subr.mxu0 0.0
    %422 = vmatpush1.msra.mxu0 0.0
    %423 = vmatprep.subr.mxu0 0.0
    %424 = vmatpush1.msra.mxu0 0.0
    %425 = vmatprep.subr.mxu0 0.0
    %426 = vmatpush1.msra.mxu0 0.0
    %427 = vmatprep.subr.mxu0 0.0
    %428 = vmatpush1.msra.mxu0 0.0
    %429 = vmatprep.subr.mxu0 0.0
    %430 = vmatpush1.msra.mxu0 0.0
    %431 = vmatprep.subr.mxu0 0.0
    %432 = vmatpush1.msra.mxu0 0.0
    %433 = vmatprep.subr.mxu0 0.0
    %434 = vmatpush1.msra.mxu0 0.0
    %435 = vmatprep.subr.mxu0 0.0
    %436 = vmatpush1.msra.mxu0 0.0
    %437 = vmatprep.subr.mxu0 0.0
    %438 = vmatpush1.msra.mxu0 0.0
    %439 = vmatprep.subr.mxu0 0.0
    %440 = vmatpush1.msra.mxu0 0.0
    %441 = vmatprep.subr.mxu0 0.0
    %442 = vmatpush1.msra.mxu0 0.0
    %443 = vmatprep.subr.mxu0 0.0
    %444 = vmatpush1.msra.mxu0 0.0
    %445 = vmatprep.subr.mxu0 0.0
    %446 = vmatpush1.msra.mxu0 0.0
    %447 = vmatprep.subr.mxu0 0.0
    %448 = vmatpush1.msra.mxu0 0.0
    %449 = vmatprep.mubr.f32.mxu0 0.0
    %450 = vmatmul.mubr.f32.gmra.mrb[0].mxu0 %v307
    %v451 = vpop.f32.mrb[0].mxu0
    %v452 = vadd.f32 0.0, %v451
    %v453 = vpop.f32.mrb[0].mxu0
    %v454 = vadd.f32 0.0, %v453
    %455 = vdwg.mxu0
    %v456 = vadd.f32 %v310, %v381
    %v457 = vadd.f32 %v311, %v383
    %v458 = vadd.f32 %v312, %v452
    %v459 = vadd.f32 %v313, %v454
    %v460 = vxor.u32 %v456, 2147483648
    %v461 = vmul.f32 %v460, 1.442695
    %v462 = vpow.pop %v461
    %v463 = vadd.f32 %v462, 1.0
    %v464 = vrcp.pop %v463
    %v465 = vmul.f32 1.0, %v464
    %v466 = vxor.u32 %v457, 2147483648
    %v467 = vmul.f32 %v466, 1.442695
    %v468 = vpow.pop %v467
    %v469 = vadd.f32 %v468, 1.0
    %v470 = vrcp.pop %v469
    %v471 = vmul.f32 1.0, %v470
    %v472 = vtanh.pop %v458
    %v473 = vxor.u32 %v459, 2147483648
    %v474 = vmul.f32 %v473, 1.442695
    %v475 = vpow.pop %v474
    %v476 = vadd.f32 %v475, 1.0
    %v477 = vrcp.pop %v476
    %v478 = vmul.f32 1.0, %v477
    %v479 = vmul.f32 %v471, %v305
    %v480 = vmul.f32 %v465, %v472
    %v481 = vadd.f32 %v479, %v480
    %v482 = vtanh.pop %v481
    %v483 = vmul.f32 %v478, %v482
    %s484 = scalar_lea.vmem [#allocation10], 8
    %485 = vst [vmem:[%s484] sm:$0xff] %v483
    %s486 = scalar_lea.vmem [#allocation4], 64
    %v487 = vld [vmem:[%s486] sm:$0xff]
    %v488 = vld [vmem:[%s486 + $0x8] sm:$0xff]
    %v489 = vld [vmem:[%s486 + $0x10] sm:$0xff]
    %v490 = vld [vmem:[%s486 + $0x18] sm:$0xff]
    %491 = vmatprep.subr.mxu0 %v69
    %492 = vmatpush1.msra.mxu0 %v68
    %493 = vmatprep.subr.mxu0 %v73
    %494 = vmatpush1.msra.mxu0 %v72
    %495 = vmatprep.subr.mxu0 %v77
    %496 = vmatpush1.msra.mxu0 %v76
    %497 = vmatprep.subr.mxu0 %v81
    %498 = vmatpush1.msra.mxu0 %v80
    %499 = vmatprep.subr.mxu0 %v85
    %500 = vmatpush1.msra.mxu0 %v84
    %501 = vmatprep.subr.mxu0 %v89
    %502 = vmatpush1.msra.mxu0 %v88
    %503 = vmatprep.subr.mxu0 %v93
    %504 = vmatpush1.msra.mxu0 %v92
    %505 = vmatprep.subr.mxu0 %v97
    %506 = vmatpush1.msra.mxu0 %v96
    %507 = vmatprep.subr.mxu0 %v101
    %508 = vmatpush1.msra.mxu0 %v100
    %509 = vmatprep.subr.mxu0 %v105
    %510 = vmatpush1.msra.mxu0 %v104
    %511 = vmatprep.subr.mxu0 %v109
    %512 = vmatpush1.msra.mxu0 %v108
    %513 = vmatprep.subr.mxu0 %v113
    %514 = vmatpush1.msra.mxu0 %v112
    %515 = vmatprep.subr.mxu0 %v117
    %516 = vmatpush1.msra.mxu0 %v116
    %517 = vmatprep.subr.mxu0 %v121
    %518 = vmatpush1.msra.mxu0 %v120
    %519 = vmatprep.subr.mxu0 %v125
    %520 = vmatpush1.msra.mxu0 %v124
    %521 = vmatprep.subr.mxu0 %v129
    %522 = vmatpush1.msra.mxu0 %v128
    %523 = vmatprep.subr.mxu0 0.0
    %524 = vmatpush1.msra.mxu0 0.0
    %525 = vmatprep.subr.mxu0 0.0
    %526 = vmatpush1.msra.mxu0 0.0
    %527 = vmatprep.subr.mxu0 0.0
    %528 = vmatpush1.msra.mxu0 0.0
    %529 = vmatprep.subr.mxu0 0.0
    %530 = vmatpush1.msra.mxu0 0.0
    %531 = vmatprep.subr.mxu0 0.0
    %532 = vmatpush1.msra.mxu0 0.0
    %533 = vmatprep.subr.mxu0 0.0
    %534 = vmatpush1.msra.mxu0 0.0
    %535 = vmatprep.subr.mxu0 0.0
    %536 = vmatpush1.msra.mxu0 0.0
    %537 = vmatprep.subr.mxu0 0.0
    %538 = vmatpush1.msra.mxu0 0.0
    %539 = vmatprep.subr.mxu0 0.0
    %540 = vmatpush1.msra.mxu0 0.0
    %541 = vmatprep.subr.mxu0 0.0
    %542 = vmatpush1.msra.mxu0 0.0
    %543 = vmatprep.subr.mxu0 0.0
    %544 = vmatpush1.msra.mxu0 0.0
    %545 = vmatprep.subr.mxu0 0.0
    %546 = vmatpush1.msra.mxu0 0.0
    %547 = vmatprep.subr.mxu0 0.0
    %548 = vmatpush1.msra.mxu0 0.0
    %549 = vmatprep.subr.mxu0 0.0
    %550 = vmatpush1.msra.mxu0 0.0
    %551 = vmatprep.subr.mxu0 0.0
    %552 = vmatpush1.msra.mxu0 0.0
    %553 = vmatprep.subr.mxu0 0.0
    %554 = vmatpush1.msra.mxu0 0.0
    %555 = vmatprep.mubr.f32.mxu0 0.0
    %556 = vmatmul.mubr.f32.gmra.mrb[0].mxu0 %v483
    %v557 = vpop.f32.mrb[0].mxu0
    %v558 = vadd.f32 0.0, %v557
    %v559 = vpop.f32.mrb[0].mxu0
    %v560 = vadd.f32 0.0, %v559
    %561 = vdwg.mxu0
    %562 = vmatprep.subr.mxu0 %v71
    %563 = vmatpush1.msra.mxu0 %v70
    %564 = vmatprep.subr.mxu0 %v75
    %565 = vmatpush1.msra.mxu0 %v74
    %566 = vmatprep.subr.mxu0 %v79
    %567 = vmatpush1.msra.mxu0 %v78
    %568 = vmatprep.subr.mxu0 %v83
    %569 = vmatpush1.msra.mxu0 %v82
    %570 = vmatprep.subr.mxu0 %v87
    %571 = vmatpush1.msra.mxu0 %v86
    %572 = vmatprep.subr.mxu0 %v91
    %573 = vmatpush1.msra.mxu0 %v90
    %574 = vmatprep.subr.mxu0 %v95
    %575 = vmatpush1.msra.mxu0 %v94
    %576 = vmatprep.subr.mxu0 %v99
    %577 = vmatpush1.msra.mxu0 %v98
    %578 = vmatprep.subr.mxu0 %v103
    %579 = vmatpush1.msra.mxu0 %v102
    %580 = vmatprep.subr.mxu0 %v107
    %581 = vmatpush1.msra.mxu0 %v106
    %582 = vmatprep.subr.mxu0 %v111
    %583 = vmatpush1.msra.mxu0 %v110
    %584 = vmatprep.subr.mxu0 %v115
    %585 = vmatpush1.msra.mxu0 %v114
    %586 = vmatprep.subr.mxu0 %v119
    %587 = vmatpush1.msra.mxu0 %v118
    %588 = vmatprep.subr.mxu0 %v123
    %589 = vmatpush1.msra.mxu0 %v122
    %590 = vmatprep.subr.mxu0 %v127
    %591 = vmatpush1.msra.mxu0 %v126
    %592 = vmatprep.subr.mxu0 %v131
    %593 = vmatpush1.msra.mxu0 %v130
    %594 = vmatprep.subr.mxu0 0.0
    %595 = vmatpush1.msra.mxu0 0.0
    %596 = vmatprep.subr.mxu0 0.0
    %597 = vmatpush1.msra.mxu0 0.0
    %598 = vmatprep.subr.mxu0 0.0
    %599 = vmatpush1.msra.mxu0 0.0
    %600 = vmatprep.subr.mxu0 0.0
    %601 = vmatpush1.msra.mxu0 0.0
    %602 = vmatprep.subr.mxu0 0.0
    %603 = vmatpush1.msra.mxu0 0.0
    %604 = vmatprep.subr.mxu0 0.0
    %605 = vmatpush1.msra.mxu0 0.0
    %606 = vmatprep.subr.mxu0 0.0
    %607 = vmatpush1.msra.mxu0 0.0
    %608 = vmatprep.subr.mxu0 0.0
    %609 = vmatpush1.msra.mxu0 0.0
    %610 = vmatprep.subr.mxu0 0.0
    %611 = vmatpush1.msra.mxu0 0.0
    %612 = vmatprep.subr.mxu0 0.0
    %613 = vmatpush1.msra.mxu0 0.0
    %614 = vmatprep.subr.mxu0 0.0
    %615 = vmatpush1.msra.mxu0 0.0
    %616 = vmatprep.subr.mxu0 0.0
    %617 = vmatpush1.msra.mxu0 0.0
    %618 = vmatprep.subr.mxu0 0.0
    %619 = vmatpush1.msra.mxu0 0.0
    %620 = vmatprep.subr.mxu0 0.0
    %621 = vmatpush1.msra.mxu0 0.0
    %622 = vmatprep.subr.mxu0 0.0
    %623 = vmatpush1.msra.mxu0 0.0
    %624 = vmatprep.subr.mxu0 0.0
    %625 = vmatpush1.msra.mxu0 0.0
    %626 = vmatprep.mubr.f32.mxu0 0.0
    %627 = vmatmul.mubr.f32.gmra.mrb[0].mxu0 %v483
    %v628 = vpop.f32.mrb[0].mxu0
    %v629 = vadd.f32 0.0, %v628
    %v630 = vpop.f32.mrb[0].mxu0
    %v631 = vadd.f32 0.0, %v630
    %632 = vdwg.mxu0
    %v633 = vadd.f32 %v487, %v558
    %v634 = vadd.f32 %v488, %v560
    %v635 = vadd.f32 %v489, %v629
    %v636 = vadd.f32 %v490, %v631
    %v637 = vxor.u32 %v633, 2147483648
    %v638 = vmul.f32 %v637, 1.442695
    %v639 = vpow.pop %v638
    %v640 = vadd.f32 %v639, 1.0
    %v641 = vrcp.pop %v640
    %v642 = vmul.f32 1.0, %v641
    %v643 = vxor.u32 %v634, 2147483648
    %v644 = vmul.f32 %v643, 1.442695
    %v645 = vpow.pop %v644
    %v646 = vadd.f32 %v645, 1.0
    %v647 = vrcp.pop %v646
    %v648 = vmul.f32 1.0, %v647
    %v649 = vtanh.pop %v635
    %v650 = vxor.u32 %v636, 2147483648
    %v651 = vmul.f32 %v650, 1.442695
    %v652 = vpow.pop %v651
    %v653 = vadd.f32 %v652, 1.0
    %v654 = vrcp.pop %v653
    %v655 = vmul.f32 1.0, %v654
    %v656 = vmul.f32 %v648, %v481
    %v657 = vmul.f32 %v642, %v649
    %v658 = vadd.f32 %v656, %v657
    %v659 = vtanh.pop %v658
    %v660 = vmul.f32 %v655, %v659
    %s661 = scalar_lea.vmem [#allocation10], 16
    %662 = vst [vmem:[%s661] sm:$0xff] %v660
    %s663 = scalar_lea.vmem [#allocation4], 96
    %v664 = vld [vmem:[%s663] sm:$0xff]
    %v665 = vld [vmem:[%s663 + $0x8] sm:$0xff]
    %v666 = vld [vmem:[%s663 + $0x10] sm:$0xff]
    %v667 = vld [vmem:[%s663 + $0x18] sm:$0xff]
    %668 = vmatprep.subr.mxu0 %v69
    %669 = vmatpush1.msra.mxu0 %v68
    %670 = vmatprep.subr.mxu0 %v73
    %671 = vmatpush1.msra.mxu0 %v72
    %672 = vmatprep.subr.mxu0 %v77
    %673 = vmatpush1.msra.mxu0 %v76
    %674 = vmatprep.subr.mxu0 %v81
    %675 = vmatpush1.msra.mxu0 %v80
    %676 = vmatprep.subr.mxu0 %v85
    %677 = vmatpush1.msra.mxu0 %v84
    %678 = vmatprep.subr.mxu0 %v89
    %679 = vmatpush1.msra.mxu0 %v88
    %680 = vmatprep.subr.mxu0 %v93
    %681 = vmatpush1.msra.mxu0 %v92
    %682 = vmatprep.subr.mxu0 %v97
    %683 = vmatpush1.msra.mxu0 %v96
    %684 = vmatprep.subr.mxu0 %v101
    %685 = vmatpush1.msra.mxu0 %v100
    %686 = vmatprep.subr.mxu0 %v105
    %687 = vmatpush1.msra.mxu0 %v104
    %688 = vmatprep.subr.mxu0 %v109
    %689 = vmatpush1.msra.mxu0 %v108
    %690 = vmatprep.subr.mxu0 %v113
    %691 = vmatpush1.msra.mxu0 %v112
    %692 = vmatprep.subr.mxu0 %v117
    %693 = vmatpush1.msra.mxu0 %v116
    %694 = vmatprep.subr.mxu0 %v121
    %695 = vmatpush1.msra.mxu0 %v120
    %696 = vmatprep.subr.mxu0 %v125
    %697 = vmatpush1.msra.mxu0 %v124
    %698 = vmatprep.subr.mxu0 %v129
    %699 = vmatpush1.msra.mxu0 %v128
    %700 = vmatprep.subr.mxu0 0.0
    %701 = vmatpush1.msra.mxu0 0.0
    %702 = vmatprep.subr.mxu0 0.0
    %703 = vmatpush1.msra.mxu0 0.0
    %704 = vmatprep.subr.mxu0 0.0
    %705 = vmatpush1.msra.mxu0 0.0
    %706 = vmatprep.subr.mxu0 0.0
    %707 = vmatpush1.msra.mxu0 0.0
    %708 = vmatprep.subr.mxu0 0.0
    %709 = vmatpush1.msra.mxu0 0.0
    %710 = vmatprep.subr.mxu0 0.0
    %711 = vmatpush1.msra.mxu0 0.0
    %712 = vmatprep.subr.mxu0 0.0
    %713 = vmatpush1.msra.mxu0 0.0
    %714 = vmatprep.subr.mxu0 0.0
    %715 = vmatpush1.msra.mxu0 0.0
    %716 = vmatprep.subr.mxu0 0.0
    %717 = vmatpush1.msra.mxu0 0.0
    %718 = vmatprep.subr.mxu0 0.0
    %719 = vmatpush1.msra.mxu0 0.0
    %720 = vmatprep.subr.mxu0 0.0
    %721 = vmatpush1.msra.mxu0 0.0
    %722 = vmatprep.subr.mxu0 0.0
    %723 = vmatpush1.msra.mxu0 0.0
    %724 = vmatprep.subr.mxu0 0.0
    %725 = vmatpush1.msra.mxu0 0.0
    %726 = vmatprep.subr.mxu0 0.0
    %727 = vmatpush1.msra.mxu0 0.0
    %728 = vmatprep.subr.mxu0 0.0
    %729 = vmatpush1.msra.mxu0 0.0
    %730 = vmatprep.subr.mxu0 0.0
    %731 = vmatpush1.msra.mxu0 0.0
    %732 = vmatprep.mubr.f32.mxu0 0.0
    %733 = vmatmul.mubr.f32.gmra.mrb[0].mxu0 %v660
    %v734 = vpop.f32.mrb[0].mxu0
    %v735 = vadd.f32 0.0, %v734
    %v736 = vpop.f32.mrb[0].mxu0
    %v737 = vadd.f32 0.0, %v736
    %738 = vdwg.mxu0
    %739 = vmatprep.subr.mxu0 %v71
    %740 = vmatpush1.msra.mxu0 %v70
    %741 = vmatprep.subr.mxu0 %v75
    %742 = vmatpush1.msra.mxu0 %v74
    %743 = vmatprep.subr.mxu0 %v79
    %744 = vmatpush1.msra.mxu0 %v78
    %745 = vmatprep.subr.mxu0 %v83
    %746 = vmatpush1.msra.mxu0 %v82
    %747 = vmatprep.subr.mxu0 %v87
    %748 = vmatpush1.msra.mxu0 %v86
    %749 = vmatprep.subr.mxu0 %v91
    %750 = vmatpush1.msra.mxu0 %v90
    %751 = vmatprep.subr.mxu0 %v95
    %752 = vmatpush1.msra.mxu0 %v94
    %753 = vmatprep.subr.mxu0 %v99
    %754 = vmatpush1.msra.mxu0 %v98
    %755 = vmatprep.subr.mxu0 %v103
    %756 = vmatpush1.msra.mxu0 %v102
    %757 = vmatprep.subr.mxu0 %v107
    %758 = vmatpush1.msra.mxu0 %v106
    %759 = vmatprep.subr.mxu0 %v111
    %760 = vmatpush1.msra.mxu0 %v110
    %761 = vmatprep.subr.mxu0 %v115
    %762 = vmatpush1.msra.mxu0 %v114
    %763 = vmatprep.subr.mxu0 %v119
    %764 = vmatpush1.msra.mxu0 %v118
    %765 = vmatprep.subr.mxu0 %v123
    %766 = vmatpush1.msra.mxu0 %v122
    %767 = vmatprep.subr.mxu0 %v127
    %768 = vmatpush1.msra.mxu0 %v126
    %769 = vmatprep.subr.mxu0 %v131
    %770 = vmatpush1.msra.mxu0 %v130
    %771 = vmatprep.subr.mxu0 0.0
    %772 = vmatpush1.msra.mxu0 0.0
    %773 = vmatprep.subr.mxu0 0.0
    %774 = vmatpush1.msra.mxu0 0.0
    %775 = vmatprep.subr.mxu0 0.0
    %776 = vmatpush1.msra.mxu0 0.0
    %777 = vmatprep.subr.mxu0 0.0
    %778 = vmatpush1.msra.mxu0 0.0
    %779 = vmatprep.subr.mxu0 0.0
    %780 = vmatpush1.msra.mxu0 0.0
    %781 = vmatprep.subr.mxu0 0.0
    %782 = vmatpush1.msra.mxu0 0.0
    %783 = vmatprep.subr.mxu0 0.0
    %784 = vmatpush1.msra.mxu0 0.0
    %785 = vmatprep.subr.mxu0 0.0
    %786 = vmatpush1.msra.mxu0 0.0
    %787 = vmatprep.subr.mxu0 0.0
    %788 = vmatpush1.msra.mxu0 0.0
    %789 = vmatprep.subr.mxu0 0.0
    %790 = vmatpush1.msra.mxu0 0.0
    %791 = vmatprep.subr.mxu0 0.0
    %792 = vmatpush1.msra.mxu0 0.0
    %793 = vmatprep.subr.mxu0 0.0
    %794 = vmatpush1.msra.mxu0 0.0
    %795 = vmatprep.subr.mxu0 0.0
    %796 = vmatpush1.msra.mxu0 0.0
    %797 = vmatprep.subr.mxu0 0.0
    %798 = vmatpush1.msra.mxu0 0.0
    %799 = vmatprep.subr.mxu0 0.0
    %800 = vmatpush1.msra.mxu0 0.0
    %801 = vmatprep.subr.mxu0 0.0
    %802 = vmatpush1.msra.mxu0 0.0
    %803 = vmatprep.mubr.f32.mxu0 0.0
    %804 = vmatmul.mubr.f32.gmra.mrb[0].mxu0 %v660
    %v805 = vpop.f32.mrb[0].mxu0
    %v806 = vadd.f32 0.0, %v805
    %v807 = vpop.f32.mrb[0].mxu0
    %v808 = vadd.f32 0.0, %v807
    %809 = vdwg.mxu0
    %v810 = vadd.f32 %v664, %v735
    %v811 = vadd.f32 %v665, %v737
    %v812 = vadd.f32 %v666, %v806
    %v813 = vadd.f32 %v667, %v808
    %v814 = vxor.u32 %v810, 2147483648
    %v815 = vmul.f32 %v814, 1.442695
    %v816 = vpow.pop %v815
    %v817 = vadd.f32 %v816, 1.0
    %v818 = vrcp.pop %v817
    %v819 = vmul.f32 1.0, %v818
    %v820 = vxor.u32 %v811, 2147483648
    %v821 = vmul.f32 %v820, 1.442695
    %v822 = vpow.pop %v821
    %v823 = vadd.f32 %v822, 1.0
    %v824 = vrcp.pop %v823
    %v825 = vmul.f32 1.0, %v824
    %v826 = vtanh.pop %v812
    %v827 = vxor.u32 %v813, 2147483648
    %v828 = vmul.f32 %v827, 1.442695
    %v829 = vpow.pop %v828
    %v830 = vadd.f32 %v829, 1.0
    %v831 = vrcp.pop %v830
    %v832 = vmul.f32 1.0, %v831
    %v833 = vmul.f32 %v825, %v658
    %v834 = vmul.f32 %v819, %v826
    %v835 = vadd.f32 %v833, %v834
    %v836 = vtanh.pop %v835
    %v837 = vmul.f32 %v832, %v836
    %s838 = scalar_lea.vmem [#allocation10], 24
    %839 = vst [vmem:[%s838] sm:$0xff] %v837
    %s840 = scalar_lea.vmem [#allocation4], 128
    %v841 = vld [vmem:[%s840] sm:$0xff]
    %v842 = vld [vmem:[%s840 + $0x8] sm:$0xff]
    %v843 = vld [vmem:[%s840 + $0x10] sm:$0xff]
    %v844 = vld [vmem:[%s840 + $0x18] sm:$0xff]
    %845 = vmatprep.subr.mxu0 %v69
    %846 = vmatpush1.msra.mxu0 %v68
    %847 = vmatprep.subr.mxu0 %v73
    %848 = vmatpush1.msra.mxu0 %v72
    %849 = vmatprep.subr.mxu0 %v77
    %850 = vmatpush1.msra.mxu0 %v76
    %851 = vmatprep.subr.mxu0 %v81
    %852 = vmatpush1.msra.mxu0 %v80
    %853 = vmatprep.subr.mxu0 %v85
    %854 = vmatpush1.msra.mxu0 %v84
    %855 = vmatprep.subr.mxu0 %v89
    %856 = vmatpush1.msra.mxu0 %v88
    %857 = vmatprep.subr.mxu0 %v93
    %858 = vmatpush1.msra.mxu0 %v92
    %859 = vmatprep.subr.mxu0 %v97
    %860 = vmatpush1.msra.mxu0 %v96
    %861 = vmatprep.subr.mxu0 %v101
    %862 = vmatpush1.msra.mxu0 %v100
    %863 = vmatprep.subr.mxu0 %v105
    %864 = vmatpush1.msra.mxu0 %v104
    %865 = vmatprep.subr.mxu0 %v109
    %866 = vmatpush1.msra.mxu0 %v108
    %867 = vmatprep.subr.mxu0 %v113
    %868 = vmatpush1.msra.mxu0 %v112
    %869 = vmatprep.subr.mxu0 %v117
    %870 = vmatpush1.msra.mxu0 %v116
    %871 = vmatprep.subr.mxu0 %v121
    %872 = vmatpush1.msra.mxu0 %v120
    %873 = vmatprep.subr.mxu0 %v125
    %874 = vmatpush1.msra.mxu0 %v124
    %875 = vmatprep.subr.mxu0 %v129
    %876 = vmatpush1.msra.mxu0 %v128
    %877 = vmatprep.subr.mxu0 0.0
    %878 = vmatpush1.msra.mxu0 0.0
    %879 = vmatprep.subr.mxu0 0.0
    %880 = vmatpush1.msra.mxu0 0.0
    %881 = vmatprep.subr.mxu0 0.0
    %882 = vmatpush1.msra.mxu0 0.0
    %883 = vmatprep.subr.mxu0 0.0
    %884 = vmatpush1.msra.mxu0 0.0
    %885 = vmatprep.subr.mxu0 0.0
    %886 = vmatpush1.msra.mxu0 0.0
    %887 = vmatprep.subr.mxu0 0.0
    %888 = vmatpush1.msra.mxu0 0.0
    %889 = vmatprep.subr.mxu0 0.0
    %890 = vmatpush1.msra.mxu0 0.0
    %891 = vmatprep.subr.mxu0 0.0
    %892 = vmatpush1.msra.mxu0 0.0
    %893 = vmatprep.subr.mxu0 0.0
    %894 = vmatpush1.msra.mxu0 0.0
    %895 = vmatprep.subr.mxu0 0.0
    %896 = vmatpush1.msra.mxu0 0.0
    %897 = vmatprep.subr.mxu0 0.0
    %898 = vmatpush1.msra.mxu0 0.0
    %899 = vmatprep.subr.mxu0 0.0
    %900 = vmatpush1.msra.mxu0 0.0
    %901 = vmatprep.subr.mxu0 0.0
    %902 = vmatpush1.msra.mxu0 0.0
    %903 = vmatprep.subr.mxu0 0.0
    %904 = vmatpush1.msra.mxu0 0.0
    %905 = vmatprep.subr.mxu0 0.0
    %906 = vmatpush1.msra.mxu0 0.0
    %907 = vmatprep.subr.mxu0 0.0
    %908 = vmatpush1.msra.mxu0 0.0
    %909 = vmatprep.mubr.f32.mxu0 0.0
    %910 = vmatmul.mubr.f32.gmra.mrb[0].mxu0 %v837
    %v911 = vpop.f32.mrb[0].mxu0
    %v912 = vadd.f32 0.0, %v911
    %v913 = vpop.f32.mrb[0].mxu0
    %v914 = vadd.f32 0.0, %v913
    %915 = vdwg.mxu0
    %916 = vmatprep.subr.mxu0 %v71
    %917 = vmatpush1.msra.mxu0 %v70
    %918 = vmatprep.subr.mxu0 %v75
    %919 = vmatpush1.msra.mxu0 %v74
    %920 = vmatprep.subr.mxu0 %v79
    %921 = vmatpush1.msra.mxu0 %v78
    %922 = vmatprep.subr.mxu0 %v83
    %923 = vmatpush1.msra.mxu0 %v82
    %924 = vmatprep.subr.mxu0 %v87
    %925 = vmatpush1.msra.mxu0 %v86
    %926 = vmatprep.subr.mxu0 %v91
    %927 = vmatpush1.msra.mxu0 %v90
    %928 = vmatprep.subr.mxu0 %v95
    %929 = vmatpush1.msra.mxu0 %v94
    %930 = vmatprep.subr.mxu0 %v99
    %931 = vmatpush1.msra.mxu0 %v98
    %932 = vmatprep.subr.mxu0 %v103
    %933 = vmatpush1.msra.mxu0 %v102
    %934 = vmatprep.subr.mxu0 %v107
    %935 = vmatpush1.msra.mxu0 %v106
    %936 = vmatprep.subr.mxu0 %v111
    %937 = vmatpush1.msra.mxu0 %v110
    %938 = vmatprep.subr.mxu0 %v115
    %939 = vmatpush1.msra.mxu0 %v114
    %940 = vmatprep.subr.mxu0 %v119
    %941 = vmatpush1.msra.mxu0 %v118
    %942 = vmatprep.subr.mxu0 %v123
    %943 = vmatpush1.msra.mxu0 %v122
    %944 = vmatprep.subr.mxu0 %v127
    %945 = vmatpush1.msra.mxu0 %v126
    %946 = vmatprep.subr.mxu0 %v131
    %947 = vmatpush1.msra.mxu0 %v130
    %948 = vmatprep.subr.mxu0 0.0
    %949 = vmatpush1.msra.mxu0 0.0
    %950 = vmatprep.subr.mxu0 0.0
    %951 = vmatpush1.msra.mxu0 0.0
    %952 = vmatprep.subr.mxu0 0.0
    %953 = vmatpush1.msra.mxu0 0.0
    %954 = vmatprep.subr.mxu0 0.0
    %955 = vmatpush1.msra.mxu0 0.0
    %956 = vmatprep.subr.mxu0 0.0
    %957 = vmatpush1.msra.mxu0 0.0
    %958 = vmatprep.subr.mxu0 0.0
    %959 = vmatpush1.msra.mxu0 0.0
    %960 = vmatprep.subr.mxu0 0.0
    %961 = vmatpush1.msra.mxu0 0.0
    %962 = vmatprep.subr.mxu0 0.0
    %963 = vmatpush1.msra.mxu0 0.0
    %964 = vmatprep.subr.mxu0 0.0
    %965 = vmatpush1.msra.mxu0 0.0
    %966 = vmatprep.subr.mxu0 0.0
    %967 = vmatpush1.msra.mxu0 0.0
    %968 = vmatprep.subr.mxu0 0.0
    %969 = vmatpush1.msra.mxu0 0.0
    %970 = vmatprep.subr.mxu0 0.0
    %971 = vmatpush1.msra.mxu0 0.0
    %972 = vmatprep.subr.mxu0 0.0
    %973 = vmatpush1.msra.mxu0 0.0
    %974 = vmatprep.subr.mxu0 0.0
    %975 = vmatpush1.msra.mxu0 0.0
    %976 = vmatprep.subr.mxu0 0.0
    %977 = vmatpush1.msra.mxu0 0.0
    %978 = vmatprep.subr.mxu0 0.0
    %979 = vmatpush1.msra.mxu0 0.0
    %980 = vmatprep.mubr.f32.mxu0 0.0
    %981 = vmatmul.mubr.f32.gmra.mrb[0].mxu0 %v837
    %v982 = vpop.f32.mrb[0].mxu0
    %v983 = vadd.f32 0.0, %v982
    %v984 = vpop.f32.mrb[0].mxu0
    %v985 = vadd.f32 0.0, %v984
    %986 = vdwg.mxu0
    %v987 = vadd.f32 %v841, %v912
    %v988 = vadd.f32 %v842, %v914
    %v989 = vadd.f32 %v843, %v983
    %v990 = vadd.f32 %v844, %v985
    %v991 = vxor.u32 %v987, 2147483648
    %v992 = vmul.f32 %v991, 1.442695
    %v993 = vpow.pop %v992
    %v994 = vadd.f32 %v993, 1.0
    %v995 = vrcp.pop %v994
    %v996 = vmul.f32 1.0, %v995
    %v997 = vxor.u32 %v988, 2147483648
    %v998 = vmul.f32 %v997, 1.442695
    %v999 = vpow.pop %v998
    %v1000 = vadd.f32 %v999, 1.0
    %v1001 = vrcp.pop %v1000
    %v1002 = vmul.f32 1.0, %v1001
    %v1003 = vtanh.pop %v989
    %v1004 = vxor.u32 %v990, 2147483648
    %v1005 = vmul.f32 %v1004, 1.442695
    %v1006 = vpow.pop %v1005
    %v1007 = vadd.f32 %v1006, 1.0
    %v1008 = vrcp.pop %v1007
    %v1009 = vmul.f32 1.0, %v1008
    %v1010 = vmul.f32 %v1002, %v835
    %v1011 = vmul.f32 %v996, %v1003
    %v1012 = vadd.f32 %v1010, %v1011
    %v1013 = vtanh.pop %v1012
    %v1014 = vmul.f32 %v1009, %v1013
    %s1015 = scalar_lea.vmem [#allocation10], 32
    %1016 = vst [vmem:[%s1015] sm:$0xff] %v1014
    %s1017 = scalar_lea.vmem [#allocation4], 160
    %v1018 = vld [vmem:[%s1017] sm:$0xff]
    %v1019 = vld [vmem:[%s1017 + $0x8] sm:$0xff]
    %v1020 = vld [vmem:[%s1017 + $0x10] sm:$0xff]
    %v1021 = vld [vmem:[%s1017 + $0x18] sm:$0xff]
    %1022 = vmatprep.subr.mxu0 %v69
    %1023 = vmatpush1.msra.mxu0 %v68
    %1024 = vmatprep.subr.mxu0 %v73
    %1025 = vmatpush1.msra.mxu0 %v72
    %1026 = vmatprep.subr.mxu0 %v77
    %1027 = vmatpush1.msra.mxu0 %v76
    %1028 = vmatprep.subr.mxu0 %v81
    %1029 = vmatpush1.msra.mxu0 %v80
    %1030 = vmatprep.subr.mxu0 %v85
    %1031 = vmatpush1.msra.mxu0 %v84
    %1032 = vmatprep.subr.mxu0 %v89
    %1033 = vmatpush1.msra.mxu0 %v88
    %1034 = vmatprep.subr.mxu0 %v93
    %1035 = vmatpush1.msra.mxu0 %v92
    %1036 = vmatprep.subr.mxu0 %v97
    %1037 = vmatpush1.msra.mxu0 %v96
    %1038 = vmatprep.subr.mxu0 %v101
    %1039 = vmatpush1.msra.mxu0 %v100
    %1040 = vmatprep.subr.mxu0 %v105
    %1041 = vmatpush1.msra.mxu0 %v104
    %1042 = vmatprep.subr.mxu0 %v109
    %1043 = vmatpush1.msra.mxu0 %v108
    %1044 = vmatprep.subr.mxu0 %v113
    %1045 = vmatpush1.msra.mxu0 %v112
    %1046 = vmatprep.subr.mxu0 %v117
    %1047 = vmatpush1.msra.mxu0 %v116
    %1048 = vmatprep.subr.mxu0 %v121
    %1049 = vmatpush1.msra.mxu0 %v120
    %1050 = vmatprep.subr.mxu0 %v125
    %1051 = vmatpush1.msra.mxu0 %v124
    %1052 = vmatprep.subr.mxu0 %v129
    %1053 = vmatpush1.msra.mxu0 %v128
    %1054 = vmatprep.subr.mxu0 0.0
    %1055 = vmatpush1.msra.mxu0 0.0
    %1056 = vmatprep.subr.mxu0 0.0
    %1057 = vmatpush1.msra.mxu0 0.0
    %1058 = vmatprep.subr.mxu0 0.0
    %1059 = vmatpush1.msra.mxu0 0.0
    %1060 = vmatprep.subr.mxu0 0.0
    %1061 = vmatpush1.msra.mxu0 0.0
    %1062 = vmatprep.subr.mxu0 0.0
    %1063 = vmatpush1.msra.mxu0 0.0
    %1064 = vmatprep.subr.mxu0 0.0
    %1065 = vmatpush1.msra.mxu0 0.0
    %1066 = vmatprep.subr.mxu0 0.0
    %1067 = vmatpush1.msra.mxu0 0.0
    %1068 = vmatprep.subr.mxu0 0.0
    %1069 = vmatpush1.msra.mxu0 0.0
    %1070 = vmatprep.subr.mxu0 0.0
    %1071 = vmatpush1.msra.mxu0 0.0
    %1072 = vmatprep.subr.mxu0 0.0
    %1073 = vmatpush1.msra.mxu0 0.0
    %1074 = vmatprep.subr.mxu0 0.0
    %1075 = vmatpush1.msra.mxu0 0.0
    %1076 = vmatprep.subr.mxu0 0.0
    %1077 = vmatpush1.msra.mxu0 0.0
    %1078 = vmatprep.subr.mxu0 0.0
    %1079 = vmatpush1.msra.mxu0 0.0
    %1080 = vmatprep.subr.mxu0 0.0
    %1081 = vmatpush1.msra.mxu0 0.0
    %1082 = vmatprep.subr.mxu0 0.0
    %1083 = vmatpush1.msra.mxu0 0.0
    %1084 = vmatprep.subr.mxu0 0.0
    %1085 = vmatpush1.msra.mxu0 0.0
    %1086 = vmatprep.mubr.f32.mxu0 0.0
    %1087 = vmatmul.mubr.f32.gmra.mrb[0].mxu0 %v1014
    %v1088 = vpop.f32.mrb[0].mxu0
    %v1089 = vadd.f32 0.0, %v1088
    %v1090 = vpop.f32.mrb[0].mxu0
    %v1091 = vadd.f32 0.0, %v1090
    %1092 = vdwg.mxu0
    %1093 = vmatprep.subr.mxu0 %v71
    %1094 = vmatpush1.msra.mxu0 %v70
    %1095 = vmatprep.subr.mxu0 %v75
    %1096 = vmatpush1.msra.mxu0 %v74
    %1097 = vmatprep.subr.mxu0 %v79
    %1098 = vmatpush1.msra.mxu0 %v78
    %1099 = vmatprep.subr.mxu0 %v83
    %1100 = vmatpush1.msra.mxu0 %v82
    %1101 = vmatprep.subr.mxu0 %v87
    %1102 = vmatpush1.msra.mxu0 %v86
    %1103 = vmatprep.subr.mxu0 %v91
    %1104 = vmatpush1.msra.mxu0 %v90
    %1105 = vmatprep.subr.mxu0 %v95
    %1106 = vmatpush1.msra.mxu0 %v94
    %1107 = vmatprep.subr.mxu0 %v99
    %1108 = vmatpush1.msra.mxu0 %v98
    %1109 = vmatprep.subr.mxu0 %v103
    %1110 = vmatpush1.msra.mxu0 %v102
    %1111 = vmatprep.subr.mxu0 %v107
    %1112 = vmatpush1.msra.mxu0 %v106
    %1113 = vmatprep.subr.mxu0 %v111
    %1114 = vmatpush1.msra.mxu0 %v110
    %1115 = vmatprep.subr.mxu0 %v115
    %1116 = vmatpush1.msra.mxu0 %v114
    %1117 = vmatprep.subr.mxu0 %v119
    %1118 = vmatpush1.msra.mxu0 %v118
    %1119 = vmatprep.subr.mxu0 %v123
    %1120 = vmatpush1.msra.mxu0 %v122
    %1121 = vmatprep.subr.mxu0 %v127
    %1122 = vmatpush1.msra.mxu0 %v126
    %1123 = vmatprep.subr.mxu0 %v131
    %1124 = vmatpush1.msra.mxu0 %v130
    %1125 = vmatprep.subr.mxu0 0.0
    %1126 = vmatpush1.msra.mxu0 0.0
    %1127 = vmatprep.subr.mxu0 0.0
    %1128 = vmatpush1.msra.mxu0 0.0
    %1129 = vmatprep.subr.mxu0 0.0
    %1130 = vmatpush1.msra.mxu0 0.0
    %1131 = vmatprep.subr.mxu0 0.0
    %1132 = vmatpush1.msra.mxu0 0.0
    %1133 = vmatprep.subr.mxu0 0.0
    %1134 = vmatpush1.msra.mxu0 0.0
    %1135 = vmatprep.subr.mxu0 0.0
    %1136 = vmatpush1.msra.mxu0 0.0
    %1137 = vmatprep.subr.mxu0 0.0
    %1138 = vmatpush1.msra.mxu0 0.0
    %1139 = vmatprep.subr.mxu0 0.0
    %1140 = vmatpush1.msra.mxu0 0.0
    %1141 = vmatprep.subr.mxu0 0.0
    %1142 = vmatpush1.msra.mxu0 0.0
    %1143 = vmatprep.subr.mxu0 0.0
    %1144 = vmatpush1.msra.mxu0 0.0
    %1145 = vmatprep.subr.mxu0 0.0
    %1146 = vmatpush1.msra.mxu0 0.0
    %1147 = vmatprep.subr.mxu0 0.0
    %1148 = vmatpush1.msra.mxu0 0.0
    %1149 = vmatprep.subr.mxu0 0.0
    %1150 = vmatpush1.msra.mxu0 0.0
    %1151 = vmatprep.subr.mxu0 0.0
    %1152 = vmatpush1.msra.mxu0 0.0
    %1153 = vmatprep.subr.mxu0 0.0
    %1154 = vmatpush1.msra.mxu0 0.0
    %1155 = vmatprep.subr.mxu0 0.0
    %1156 = vmatpush1.msra.mxu0 0.0
    %1157 = vmatprep.mubr.f32.mxu0 0.0
    %1158 = vmatmul.mubr.f32.gmra.mrb[0].mxu0 %v1014
    %v1159 = vpop.f32.mrb[0].mxu0
    %v1160 = vadd.f32 0.0, %v1159
    %v1161 = vpop.f32.mrb[0].mxu0
    %v1162 = vadd.f32 0.0, %v1161
    %1163 = vdwg.mxu0
    %v1164 = vadd.f32 %v1018, %v1089
    %v1165 = vadd.f32 %v1019, %v1091
    %v1166 = vadd.f32 %v1020, %v1160
    %v1167 = vadd.f32 %v1021, %v1162
    %v1168 = vxor.u32 %v1164, 2147483648
    %v1169 = vmul.f32 %v1168, 1.442695
    %v1170 = vpow.pop %v1169
    %v1171 = vadd.f32 %v1170, 1.0
    %v1172 = vrcp.pop %v1171
    %v1173 = vmul.f32 1.0, %v1172
    %v1174 = vxor.u32 %v1165, 2147483648
    %v1175 = vmul.f32 %v1174, 1.442695
    %v1176 = vpow.pop %v1175
    %v1177 = vadd.f32 %v1176, 1.0
    %v1178 = vrcp.pop %v1177
    %v1179 = vmul.f32 1.0, %v1178
    %v1180 = vtanh.pop %v1166
    %v1181 = vxor.u32 %v1167, 2147483648
    %v1182 = vmul.f32 %v1181, 1.442695
    %v1183 = vpow.pop %v1182
    %v1184 = vadd.f32 %v1183, 1.0
    %v1185 = vrcp.pop %v1184
    %v1186 = vmul.f32 1.0, %v1185
    %v1187 = vmul.f32 %v1179, %v1012
    %v1188 = vmul.f32 %v1173, %v1180
    %v1189 = vadd.f32 %v1187, %v1188
    %v1190 = vtanh.pop %v1189
    %v1191 = vmul.f32 %v1186, %v1190
    %s1192 = scalar_lea.vmem [#allocation10], 40
    %1193 = vst [vmem:[%s1192] sm:$0xff] %v1191
    %s1194 = scalar_lea.vmem [#allocation4], 192
    %v1195 = vld [vmem:[%s1194] sm:$0xff]
    %v1196 = vld [vmem:[%s1194 + $0x8] sm:$0xff]
    %v1197 = vld [vmem:[%s1194 + $0x10] sm:$0xff]
    %v1198 = vld [vmem:[%s1194 + $0x18] sm:$0xff]
    %1199 = vmatprep.subr.mxu0 %v69
    %1200 = vmatpush1.msra.mxu0 %v68
    %1201 = vmatprep.subr.mxu0 %v73
    %1202 = vmatpush1.msra.mxu0 %v72
    %1203 = vmatprep.subr.mxu0 %v77
    %1204 = vmatpush1.msra.mxu0 %v76
    %1205 = vmatprep.subr.mxu0 %v81
    %1206 = vmatpush1.msra.mxu0 %v80
    %1207 = vmatprep.subr.mxu0 %v85
    %1208 = vmatpush1.msra.mxu0 %v84
    %1209 = vmatprep.subr.mxu0 %v89
    %1210 = vmatpush1.msra.mxu0 %v88
    %1211 = vmatprep.subr.mxu0 %v93
    %1212 = vmatpush1.msra.mxu0 %v92
    %1213 = vmatprep.subr.mxu0 %v97
    %1214 = vmatpush1.msra.mxu0 %v96
    %1215 = vmatprep.subr.mxu0 %v101
    %1216 = vmatpush1.msra.mxu0 %v100
    %1217 = vmatprep.subr.mxu0 %v105
    %1218 = vmatpush1.msra.mxu0 %v104
    %1219 = vmatprep.subr.mxu0 %v109
    %1220 = vmatpush1.msra.mxu0 %v108
    %1221 = vmatprep.subr.mxu0 %v113
    %1222 = vmatpush1.msra.mxu0 %v112
    %1223 = vmatprep.subr.mxu0 %v117
    %1224 = vmatpush1.msra.mxu0 %v116
    %1225 = vmatprep.subr.mxu0 %v121
    %1226 = vmatpush1.msra.mxu0 %v120
    %1227 = vmatprep.subr.mxu0 %v125
    %1228 = vmatpush1.msra.mxu0 %v124
    %1229 = vmatprep.subr.mxu0 %v129
    %1230 = vmatpush1.msra.mxu0 %v128
    %1231 = vmatprep.subr.mxu0 0.0
    %1232 = vmatpush1.msra.mxu0 0.0
    %1233 = vmatprep.subr.mxu0 0.0
    %1234 = vmatpush1.msra.mxu0 0.0
    %1235 = vmatprep.subr.mxu0 0.0
    %1236 = vmatpush1.msra.mxu0 0.0
    %1237 = vmatprep.subr.mxu0 0.0
    %1238 = vmatpush1.msra.mxu0 0.0
    %1239 = vmatprep.subr.mxu0 0.0
    %1240 = vmatpush1.msra.mxu0 0.0
    %1241 = vmatprep.subr.mxu0 0.0
    %1242 = vmatpush1.msra.mxu0 0.0
    %1243 = vmatprep.subr.mxu0 0.0
    %1244 = vmatpush1.msra.mxu0 0.0
    %1245 = vmatprep.subr.mxu0 0.0
    %1246 = vmatpush1.msra.mxu0 0.0
    %1247 = vmatprep.subr.mxu0 0.0
    %1248 = vmatpush1.msra.mxu0 0.0
    %1249 = vmatprep.subr.mxu0 0.0
    %1250 = vmatpush1.msra.mxu0 0.0
    %1251 = vmatprep.subr.mxu0 0.0
    %1252 = vmatpush1.msra.mxu0 0.0
    %1253 = vmatprep.subr.mxu0 0.0
    %1254 = vmatpush1.msra.mxu0 0.0
    %1255 = vmatprep.subr.mxu0 0.0
    %1256 = vmatpush1.msra.mxu0 0.0
    %1257 = vmatprep.subr.mxu0 0.0
    %1258 = vmatpush1.msra.mxu0 0.0
    %1259 = vmatprep.subr.mxu0 0.0
    %1260 = vmatpush1.msra.mxu0 0.0
    %1261 = vmatprep.subr.mxu0 0.0
    %1262 = vmatpush1.msra.mxu0 0.0
    %1263 = vmatprep.mubr.f32.mxu0 0.0
    %1264 = vmatmul.mubr.f32.gmra.mrb[0].mxu0 %v1191
    %v1265 = vpop.f32.mrb[0].mxu0
    %v1266 = vadd.f32 0.0, %v1265
    %v1267 = vpop.f32.mrb[0].mxu0
    %v1268 = vadd.f32 0.0, %v1267
    %1269 = vdwg.mxu0
    %1270 = vmatprep.subr.mxu0 %v71
    %1271 = vmatpush1.msra.mxu0 %v70
    %1272 = vmatprep.subr.mxu0 %v75
    %1273 = vmatpush1.msra.mxu0 %v74
    %1274 = vmatprep.subr.mxu0 %v79
    %1275 = vmatpush1.msra.mxu0 %v78
    %1276 = vmatprep.subr.mxu0 %v83
    %1277 = vmatpush1.msra.mxu0 %v82
    %1278 = vmatprep.subr.mxu0 %v87
    %1279 = vmatpush1.msra.mxu0 %v86
    %1280 = vmatprep.subr.mxu0 %v91
    %1281 = vmatpush1.msra.mxu0 %v90
    %1282 = vmatprep.subr.mxu0 %v95
    %1283 = vmatpush1.msra.mxu0 %v94
    %1284 = vmatprep.subr.mxu0 %v99
    %1285 = vmatpush1.msra.mxu0 %v98
    %1286 = vmatprep.subr.mxu0 %v103
    %1287 = vmatpush1.msra.mxu0 %v102
    %1288 = vmatprep.subr.mxu0 %v107
    %1289 = vmatpush1.msra.mxu0 %v106
    %1290 = vmatprep.subr.mxu0 %v111
    %1291 = vmatpush1.msra.mxu0 %v110
    %1292 = vmatprep.subr.mxu0 %v115
    %1293 = vmatpush1.msra.mxu0 %v114
    %1294 = vmatprep.subr.mxu0 %v119
    %1295 = vmatpush1.msra.mxu0 %v118
    %1296 = vmatprep.subr.mxu0 %v123
    %1297 = vmatpush1.msra.mxu0 %v122
    %1298 = vmatprep.subr.mxu0 %v127
    %1299 = vmatpush1.msra.mxu0 %v126
    %1300 = vmatprep.subr.mxu0 %v131
    %1301 = vmatpush1.msra.mxu0 %v130
    %1302 = vmatprep.subr.mxu0 0.0
    %1303 = vmatpush1.msra.mxu0 0.0
    %1304 = vmatprep.subr.mxu0 0.0
    %1305 = vmatpush1.msra.mxu0 0.0
    %1306 = vmatprep.subr.mxu0 0.0
    %1307 = vmatpush1.msra.mxu0 0.0
    %1308 = vmatprep.subr.mxu0 0.0
    %1309 = vmatpush1.msra.mxu0 0.0
    %1310 = vmatprep.subr.mxu0 0.0
    %1311 = vmatpush1.msra.mxu0 0.0
    %1312 = vmatprep.subr.mxu0 0.0
    %1313 = vmatpush1.msra.mxu0 0.0
    %1314 = vmatprep.subr.mxu0 0.0
    %1315 = vmatpush1.msra.mxu0 0.0
    %1316 = vmatprep.subr.mxu0 0.0
    %1317 = vmatpush1.msra.mxu0 0.0
    %1318 = vmatprep.subr.mxu0 0.0
    %1319 = vmatpush1.msra.mxu0 0.0
    %1320 = vmatprep.subr.mxu0 0.0
    %1321 = vmatpush1.msra.mxu0 0.0
    %1322 = vmatprep.subr.mxu0 0.0
    %1323 = vmatpush1.msra.mxu0 0.0
    %1324 = vmatprep.subr.mxu0 0.0
    %1325 = vmatpush1.msra.mxu0 0.0
    %1326 = vmatprep.subr.mxu0 0.0
    %1327 = vmatpush1.msra.mxu0 0.0
    %1328 = vmatprep.subr.mxu0 0.0
    %1329 = vmatpush1.msra.mxu0 0.0
    %1330 = vmatprep.subr.mxu0 0.0
    %1331 = vmatpush1.msra.mxu0 0.0
    %1332 = vmatprep.subr.mxu0 0.0
    %1333 = vmatpush1.msra.mxu0 0.0
    %1334 = vmatprep.mubr.f32.mxu0 0.0
    %1335 = vmatmul.mubr.f32.gmra.mrb[0].mxu0 %v1191
    %v1336 = vpop.f32.mrb[0].mxu0
    %v1337 = vadd.f32 0.0, %v1336
    %v1338 = vpop.f32.mrb[0].mxu0
    %v1339 = vadd.f32 0.0, %v1338
    %1340 = vdwg.mxu0
    %v1341 = vadd.f32 %v1195, %v1266
    %v1342 = vadd.f32 %v1196, %v1268
    %v1343 = vadd.f32 %v1197, %v1337
    %v1344 = vadd.f32 %v1198, %v1339
    %v1345 = vxor.u32 %v1341, 2147483648
    %v1346 = vmul.f32 %v1345, 1.442695
    %v1347 = vpow.pop %v1346
    %v1348 = vadd.f32 %v1347, 1.0
    %v1349 = vrcp.pop %v1348
    %v1350 = vmul.f32 1.0, %v1349
    %v1351 = vxor.u32 %v1342, 2147483648
    %v1352 = vmul.f32 %v1351, 1.442695
    %v1353 = vpow.pop %v1352
    %v1354 = vadd.f32 %v1353, 1.0
    %v1355 = vrcp.pop %v1354
    %v1356 = vmul.f32 1.0, %v1355
    %v1357 = vtanh.pop %v1343
    %v1358 = vxor.u32 %v1344, 2147483648
    %v1359 = vmul.f32 %v1358, 1.442695
    %v1360 = vpow.pop %v1359
    %v1361 = vadd.f32 %v1360, 1.0
    %v1362 = vrcp.pop %v1361
    %v1363 = vmul.f32 1.0, %v1362
    %v1364 = vmul.f32 %v1356, %v1189
    %v1365 = vmul.f32 %v1350, %v1357
    %v1366 = vadd.f32 %v1364, %v1365
    %v1367 = vtanh.pop %v1366
    %v1368 = vmul.f32 %v1363, %v1367
    %s1369 = scalar_lea.vmem [#allocation10], 48
    %1370 = vst [vmem:[%s1369] sm:$0xff] %v1368
    %s1371 = scalar_lea.vmem [#allocation4], 224
    %v1372 = vld [vmem:[%s1371] sm:$0xff]
    %v1373 = vld [vmem:[%s1371 + $0x8] sm:$0xff]
    %v1374 = vld [vmem:[%s1371 + $0x10] sm:$0xff]
    %v1375 = vld [vmem:[%s1371 + $0x18] sm:$0xff]
    %1376 = vmatprep.subr.mxu0 %v69
    %1377 = vmatpush1.msra.mxu0 %v68
    %1378 = vmatprep.subr.mxu0 %v73
    %1379 = vmatpush1.msra.mxu0 %v72
    %1380 = vmatprep.subr.mxu0 %v77
    %1381 = vmatpush1.msra.mxu0 %v76
    %1382 = vmatprep.subr.mxu0 %v81
    %1383 = vmatpush1.msra.mxu0 %v80
    %1384 = vmatprep.subr.mxu0 %v85
    %1385 = vmatpush1.msra.mxu0 %v84
    %1386 = vmatprep.subr.mxu0 %v89
    %1387 = vmatpush1.msra.mxu0 %v88
    %1388 = vmatprep.subr.mxu0 %v93
    %1389 = vmatpush1.msra.mxu0 %v92
    %1390 = vmatprep.subr.mxu0 %v97
    %1391 = vmatpush1.msra.mxu0 %v96
    %1392 = vmatprep.subr.mxu0 %v101
    %1393 = vmatpush1.msra.mxu0 %v100
    %1394 = vmatprep.subr.mxu0 %v105
    %1395 = vmatpush1.msra.mxu0 %v104
    %1396 = vmatprep.subr.mxu0 %v109
    %1397 = vmatpush1.msra.mxu0 %v108
    %1398 = vmatprep.subr.mxu0 %v113
    %1399 = vmatpush1.msra.mxu0 %v112
    %1400 = vmatprep.subr.mxu0 %v117
    %1401 = vmatpush1.msra.mxu0 %v116
    %1402 = vmatprep.subr.mxu0 %v121
    %1403 = vmatpush1.msra.mxu0 %v120
    %1404 = vmatprep.subr.mxu0 %v125
    %1405 = vmatpush1.msra.mxu0 %v124
    %1406 = vmatprep.subr.mxu0 %v129
    %1407 = vmatpush1.msra.mxu0 %v128
    %1408 = vmatprep.subr.mxu0 0.0
    %1409 = vmatpush1.msra.mxu0 0.0
    %1410 = vmatprep.subr.mxu0 0.0
    %1411 = vmatpush1.msra.mxu0 0.0
    %1412 = vmatprep.subr.mxu0 0.0
    %1413 = vmatpush1.msra.mxu0 0.0
    %1414 = vmatprep.subr.mxu0 0.0
    %1415 = vmatpush1.msra.mxu0 0.0
    %1416 = vmatprep.subr.mxu0 0.0
    %1417 = vmatpush1.msra.mxu0 0.0
    %1418 = vmatprep.subr.mxu0 0.0
    %1419 = vmatpush1.msra.mxu0 0.0
    %1420 = vmatprep.subr.mxu0 0.0
    %1421 = vmatpush1.msra.mxu0 0.0
    %1422 = vmatprep.subr.mxu0 0.0
    %1423 = vmatpush1.msra.mxu0 0.0
    %1424 = vmatprep.subr.mxu0 0.0
    %1425 = vmatpush1.msra.mxu0 0.0
    %1426 = vmatprep.subr.mxu0 0.0
    %1427 = vmatpush1.msra.mxu0 0.0
    %1428 = vmatprep.subr.mxu0 0.0
    %1429 = vmatpush1.msra.mxu0 0.0
    %1430 = vmatprep.subr.mxu0 0.0
    %1431 = vmatpush1.msra.mxu0 0.0
    %1432 = vmatprep.subr.mxu0 0.0
    %1433 = vmatpush1.msra.mxu0 0.0
    %1434 = vmatprep.subr.mxu0 0.0
    %1435 = vmatpush1.msra.mxu0 0.0
    %1436 = vmatprep.subr.mxu0 0.0
    %1437 = vmatpush1.msra.mxu0 0.0
    %1438 = vmatprep.subr.mxu0 0.0
    %1439 = vmatpush1.msra.mxu0 0.0
    %1440 = vmatprep.mubr.f32.mxu0 0.0
    %1441 = vmatmul.mubr.f32.gmra.mrb[0].mxu0 %v1368
    %v1442 = vpop.f32.mrb[0].mxu0
    %v1443 = vadd.f32 0.0, %v1442
    %v1444 = vpop.f32.mrb[0].mxu0
    %v1445 = vadd.f32 0.0, %v1444
    %1446 = vdwg.mxu0
    %1447 = vmatprep.subr.mxu0 %v71
    %1448 = vmatpush1.msra.mxu0 %v70
    %1449 = vmatprep.subr.mxu0 %v75
    %1450 = vmatpush1.msra.mxu0 %v74
    %1451 = vmatprep.subr.mxu0 %v79
    %1452 = vmatpush1.msra.mxu0 %v78
    %1453 = vmatprep.subr.mxu0 %v83
    %1454 = vmatpush1.msra.mxu0 %v82
    %1455 = vmatprep.subr.mxu0 %v87
    %1456 = vmatpush1.msra.mxu0 %v86
    %1457 = vmatprep.subr.mxu0 %v91
    %1458 = vmatpush1.msra.mxu0 %v90
    %1459 = vmatprep.subr.mxu0 %v95
    %1460 = vmatpush1.msra.mxu0 %v94
    %1461 = vmatprep.subr.mxu0 %v99
    %1462 = vmatpush1.msra.mxu0 %v98
    %1463 = vmatprep.subr.mxu0 %v103
    %1464 = vmatpush1.msra.mxu0 %v102
    %1465 = vmatprep.subr.mxu0 %v107
    %1466 = vmatpush1.msra.mxu0 %v106
    %1467 = vmatprep.subr.mxu0 %v111
    %1468 = vmatpush1.msra.mxu0 %v110
    %1469 = vmatprep.subr.mxu0 %v115
    %1470 = vmatpush1.msra.mxu0 %v114
    %1471 = vmatprep.subr.mxu0 %v119
    %1472 = vmatpush1.msra.mxu0 %v118
    %1473 = vmatprep.subr.mxu0 %v123
    %1474 = vmatpush1.msra.mxu0 %v122
    %1475 = vmatprep.subr.mxu0 %v127
    %1476 = vmatpush1.msra.mxu0 %v126
    %1477 = vmatprep.subr.mxu0 %v131
    %1478 = vmatpush1.msra.mxu0 %v130
    %1479 = vmatprep.subr.mxu0 0.0
    %1480 = vmatpush1.msra.mxu0 0.0
    %1481 = vmatprep.subr.mxu0 0.0
    %1482 = vmatpush1.msra.mxu0 0.0
    %1483 = vmatprep.subr.mxu0 0.0
    %1484 = vmatpush1.msra.mxu0 0.0
    %1485 = vmatprep.subr.mxu0 0.0
    %1486 = vmatpush1.msra.mxu0 0.0
    %1487 = vmatprep.subr.mxu0 0.0
    %1488 = vmatpush1.msra.mxu0 0.0
    %1489 = vmatprep.subr.mxu0 0.0
    %1490 = vmatpush1.msra.mxu0 0.0
    %1491 = vmatprep.subr.mxu0 0.0
    %1492 = vmatpush1.msra.mxu0 0.0
    %1493 = vmatprep.subr.mxu0 0.0
    %1494 = vmatpush1.msra.mxu0 0.0
    %1495 = vmatprep.subr.mxu0 0.0
    %1496 = vmatpush1.msra.mxu0 0.0
    %1497 = vmatprep.subr.mxu0 0.0
    %1498 = vmatpush1.msra.mxu0 0.0
    %1499 = vmatprep.subr.mxu0 0.0
    %1500 = vmatpush1.msra.mxu0 0.0
    %1501 = vmatprep.subr.mxu0 0.0
    %1502 = vmatpush1.msra.mxu0 0.0
    %1503 = vmatprep.subr.mxu0 0.0
    %1504 = vmatpush1.msra.mxu0 0.0
    %1505 = vmatprep.subr.mxu0 0.0
    %1506 = vmatpush1.msra.mxu0 0.0
    %1507 = vmatprep.subr.mxu0 0.0
    %1508 = vmatpush1.msra.mxu0 0.0
    %1509 = vmatprep.subr.mxu0 0.0
    %1510 = vmatpush1.msra.mxu0 0.0
    %1511 = vmatprep.mubr.f32.mxu0 0.0
    %1512 = vmatmul.mubr.f32.gmra.mrb[0].mxu0 %v1368
    %v1513 = vpop.f32.mrb[0].mxu0
    %v1514 = vadd.f32 0.0, %v1513
    %v1515 = vpop.f32.mrb[0].mxu0
    %v1516 = vadd.f32 0.0, %v1515
    %1517 = vdwg.mxu0
    %v1518 = vadd.f32 %v1372, %v1443
    %v1519 = vadd.f32 %v1373, %v1445
    %v1520 = vadd.f32 %v1374, %v1514
    %v1521 = vadd.f32 %v1375, %v1516
    %v1522 = vxor.u32 %v1518, 2147483648
    %v1523 = vmul.f32 %v1522, 1.442695
    %v1524 = vpow.pop %v1523
    %v1525 = vadd.f32 %v1524, 1.0
    %v1526 = vrcp.pop %v1525
    %v1527 = vmul.f32 1.0, %v1526
    %v1528 = vxor.u32 %v1519, 2147483648
    %v1529 = vmul.f32 %v1528, 1.442695
    %v1530 = vpow.pop %v1529
    %v1531 = vadd.f32 %v1530, 1.0
    %v1532 = vrcp.pop %v1531
    %v1533 = vmul.f32 1.0, %v1532
    %v1534 = vtanh.pop %v1520
    %v1535 = vxor.u32 %v1521, 2147483648
    %v1536 = vmul.f32 %v1535, 1.442695
    %v1537 = vpow.pop %v1536
    %v1538 = vadd.f32 %v1537, 1.0
    %v1539 = vrcp.pop %v1538
    %v1540 = vmul.f32 1.0, %v1539
    %v1541 = vmul.f32 %v1533, %v1366
    %v1542 = vmul.f32 %v1527, %v1534
    %v1543 = vadd.f32 %v1541, %v1542
    %v1544 = vtanh.pop %v1543
    %v1545 = vmul.f32 %v1540, %v1544
    %s1546 = scalar_lea.vmem [#allocation10], 56
    %1547 = vst [vmem:[%s1546] sm:$0xff] %v1545
    %1548 = vst [vmem:[#allocation2] sm:$0xff] %v1545
    %1549 = vst [vmem:[#allocation3] sm:$0xff] %v1543
    // Predicated region
    $region34: #{tpu_custom_call.1} parent=1 // pred_check
      %p1550 = pneg %p60
    $region35: #{tpu_custom_call.1} parent=1 // pred_check_branch
      %1552 = sbr.rel (%p1550) target = $region37
    $region36: #{tpu_custom_call.1} parent=1 // pred_region
      %1553 = vst [vmem:[#allocation11] sm:$0xff] %v1543
    $region37: #{tpu_custom_call.1} parent=1 // pred_fallthru
      _
    // Predicated region
    $region38: #{tpu_custom_call.1} parent=1 // pred_check
      _
    $region39: #{tpu_custom_call.1} parent=1 // pred_check_branch
      %1555 = sbr.rel (0) target = $region41
    $region40: #{tpu_custom_call.1} parent=1 // pred_region
      %s1557 = ssub.s32 1024, 1024
      %1558 = vsyncadd [#allocation6], %s1557
      %s1559 = sshll.u32 [#allocation10], 4
      %s1560 = int_to_ptr.vmem [resolvable:$true] %s1559
      %1565 = dma.vmem_to_hbm [thread:$0]  %s1560, 1024, %s4, [#allocation6], 128, 128, 8
    $region41: #{tpu_custom_call.1} parent=1 // pred_fallthru
      _
    // Predicated region
    $region42: #{tpu_custom_call.1} parent=1 // pred_check
      _
    $region43: #{tpu_custom_call.1} parent=1 // pred_check_branch
      %1567 = sbr.rel (0) target = $region45
    $region44: #{tpu_custom_call.1} parent=1 // pred_region
      %s1569 = ssub.s32 128, 128
      %1570 = vsyncadd [#allocation12], %s1569
      %s1572 = sshll.u32 [#allocation11], 4
      %s1573 = int_to_ptr.vmem [resolvable:$true] %s1572
      %1575 = dma.vmem_to_hbm [thread:$0]  %s1573, 128, %s5, [#allocation12]
    $region45: #{tpu_custom_call.1} parent=1 // pred_fallthru
      _
    // Predicated region
    $region46: #{tpu_custom_call.1} parent=1 // pred_check
      _
    $region47: #{tpu_custom_call.1} parent=1 // pred_check_branch
      %1577 = sbr.rel (0) target = $region49
    $region48: #{tpu_custom_call.1} parent=1 // pred_region
      %1578 = dma.done [#allocation6], 1024
    $region49: #{tpu_custom_call.1} parent=1 // pred_fallthru
      _
    // Predicated region
    $region50: #{tpu_custom_call.1} parent=1 // pred_check
      _
    $region51: #{tpu_custom_call.1} parent=1 // pred_check_branch
      %1580 = sbr.rel (0) target = $region53
    $region52: #{tpu_custom_call.1} parent=1 // pred_region
      %1581 = dma.done [#allocation12], 128
    $region53: #{tpu_custom_call.1} parent=1 // pred_fallthru
      _
    %1582 = vsyncpa [#allocation5], 1
    %1583 = vsyncpa [#allocation8], 1
    %1584 = vsyncpa [#allocation6], 1
    %1585 = vsyncpa [#allocation12], 1

</llo_original>
